<compile_context>
chip_gen: v7x
topology: tpu7x:2x2x1
jax: 0.10.0
libtpu: 0.0.40
codegen_flags: <defaults>
</compile_context>

<pallas_src>
import jax
import jax.numpy as jnp
from jax.experimental import pallas as pl
from jax.experimental.pallas import tpu as pltpu


def _make_kernel(ks, Hp, Wp, Cin, Cout, L, n_valid, eps):
    K = ks * ks * ks * Cin
    count = float(n_valid)  # Cout * Do * Ho * Wo

    def kernel(x_ref, w_ref, b_ref, g_ref, beta_ref, mask_ref, o_ref, col_ref):
        # x_ref:    (1, Cin, P_ext)  zero-padded sample, spatial dims flattened
        # w_ref:    (Cout, K)        conv weight as one dense 2-D slab
        # b_ref:    (Cout, 1)        conv bias
        # g_ref:    (Cout, 1)        GroupNorm gamma
        # beta_ref: (Cout, 1)        GroupNorm beta
        # mask_ref: (1, L)           1.0 at real conv-output positions, else 0.0
        # o_ref:    (1, Cout, L)     output (flat padded spatial domain, NCDHW order)
        # col_ref:  (K, L)           VMEM im2col scratch (K on sublanes, L on lanes)

        # --- im2col: each tap is a contiguous lane-slice of the flattened
        #     padded input; no reshapes, no strided 3-D slices. ---
        for kd in range(ks):
            for kh in range(ks):
                for kw in range(ks):
                    tap = (kd * ks + kh) * ks + kw
                    off = (kd * Hp + kh) * Wp + kw
                    col_ref[tap * Cin:(tap + 1) * Cin, :] = x_ref[0, :, off:off + L]

        # --- single fused MXU matmul: (Cout, K) @ (K, L) -> (Cout, L) ---
        acc = jnp.dot(w_ref[...], col_ref[...], preferred_element_type=jnp.float32)

        # conv bias + ReLU
        y = jnp.maximum(acc + b_ref[...], 0.0)

        # GroupNorm(num_groups=1): stats over (C, D, H, W) of the valid
        # output positions only (biased variance), then per-channel affine.
        mask = mask_ref[...]                      # (1, L)
        mean = jnp.sum(y * mask) / count
        centered = (y - mean) * mask              # zero at invalid positions
        var = jnp.sum(centered * centered) / count
        inv_std = jax.lax.rsqrt(var + eps)
        out = centered * inv_std * g_ref[...] + beta_ref[...]
        o_ref[0] = out.astype(o_ref.dtype)

    return kernel


def conv3d_block(x, weight, bias, gamma, beta, *, ks, pd, s=1, eps=1e-5):
    """x: (N, Cin, D, H, W) f32; weight: (Cout, Cin, ks, ks, ks) — PyTorch layout."""
    N, Cin, D, H, W = x.shape
    Cout = weight.shape[0]
    Do = (D + 2 * pd - ks) // s + 1
    Ho = (H + 2 * pd - ks) // s + 1
    Wo = (W + 2 * pd - ks) // s + 1
    Dp, Hp, Wp = D + 2 * pd, H + 2 * pd, W + 2 * pd
    De, He, We = (Do - 1) * s + 1, (Ho - 1) * s + 1, (Wo - 1) * s + 1

    L = De * Hp * Wp                         # kernel output lane width (flat padded domain)
    off_max = (ks - 1) * (Hp * Wp + Wp + 1)  # largest tap offset
    P = Dp * Hp * Wp
    P_ext = L + off_max                      # = P + (ks-1)*(Wp+1)
    K = ks * ks * ks * Cin

    # Input prep: zero-pad spatial dims (still NCDHW, no transpose), flatten
    # spatial, pad the tail so every tap slice [off, off+L) is in bounds.
    x_flat = jnp.pad(x, ((0, 0), (0, 0), (pd, pd), (pd, pd), (pd, pd))).reshape(N, Cin, P)
    x_flat = jnp.pad(x_flat, ((0, 0), (0, 0), (0, P_ext - P)))

    # Weight as one dense (Cout, K) slab; row order matches the im2col build:
    # row index = ((kd*ks + kh)*ks + kw)*Cin + ci.
    w2 = jnp.transpose(weight, (0, 2, 3, 4, 1)).reshape(Cout, K).astype(jnp.float32)
    b2 = bias.reshape(Cout, 1).astype(jnp.float32)
    g2 = gamma.reshape(Cout, 1).astype(jnp.float32)
    beta2 = beta.reshape(Cout, 1).astype(jnp.float32)

    # Validity mask over the flat padded output domain (handles stride s too).
    p = jnp.arange(L, dtype=jnp.int32)
    d = p // (Hp * Wp)
    h = (p // Wp) % Hp
    w = p % Wp
    valid = ((d % s == 0) & (d // s < Do) &
             (h % s == 0) & (h // s < Ho) &
             (w % s == 0) & (w // s < Wo))
    mask = valid.astype(jnp.float32).reshape(1, L)

    kernel = _make_kernel(ks, Hp, Wp, Cin, Cout, L, Cout * Do * Ho * Wo, eps)

    out_flat = pl.pallas_call(
        kernel,
        out_shape=jax.ShapeDtypeStruct((N, Cout, L), jnp.float32),
        grid=(N,),
        in_specs=[
            pl.BlockSpec((1, Cin, P_ext), lambda n: (n, 0, 0)),
            pl.BlockSpec((Cout, K), lambda n: (0, 0)),
            pl.BlockSpec((Cout, 1), lambda n: (0, 0)),
            pl.BlockSpec((Cout, 1), lambda n: (0, 0)),
            pl.BlockSpec((Cout, 1), lambda n: (0, 0)),
            pl.BlockSpec((1, L), lambda n: (0, 0)),
        ],
        out_specs=pl.BlockSpec((1, Cout, L), lambda n: (n, 0, 0)),
        scratch_shapes=[pltpu.VMEM((K, L), jnp.float32)],
        compiler_params=pltpu.CompilerParams(
            dimension_semantics=("parallel",),
            vmem_limit_bytes=32 * 1024 * 1024,
        ),
    )(x_flat, w2, b2, g2, beta2, mask)

    # Extract the real conv outputs (NCDHW already; just a reshape + slice,
    # no transpose anywhere).
    out = out_flat.reshape(N, Cout, De, Hp, Wp)[:, :, 0:De:s, 0:He:s, 0:We:s]
    return out


def _reference(x, weight, bias, gamma, beta, *, ks, pd, s=1, eps=1e-5):
    y = jax.lax.conv_general_dilated(
        x, weight, window_strides=(s, s, s), padding=[(pd, pd)] * 3,
        dimension_numbers=("NCDHW", "OIDHW", "NCDHW"))
    y = y + bias.reshape(1, -1, 1, 1, 1)
    y = jnp.maximum(y, 0.0)
    mean = jnp.mean(y, axis=(1, 2, 3, 4), keepdims=True)
    var = jnp.mean((y - mean) ** 2, axis=(1, 2, 3, 4), keepdims=True)
    y = (y - mean) / jnp.sqrt(var + eps)
    return y * gamma.reshape(1, -1, 1, 1, 1) + beta.reshape(1, -1, 1, 1, 1)


if __name__ == "__main__":
    # Small shapes consistent with Conv3dBlock(in_c=4, out_c=8, ks=3, pd=1, s=1)
    N, Cin, Cout, D, H, W = 2, 4, 8, 8, 8, 8
    ks, pd, s = 3, 1, 1

    key = jax.random.PRNGKey(0)
    kx, kw, kb, kg, kbeta = jax.random.split(key, 5)
    x = jax.random.normal(kx, (N, Cin, D, H, W), dtype=jnp.float32)
    weight = 0.1 * jax.random.normal(kw, (Cout, Cin, ks, ks, ks), dtype=jnp.float32)
    bias = 0.1 * jax.random.normal(kb, (Cout,), dtype=jnp.float32)
    gamma = 1.0 + 0.1 * jax.random.normal(kg, (Cout,), dtype=jnp.float32)
    beta = 0.1 * jax.random.normal(kbeta, (Cout,), dtype=jnp.float32)

    out = conv3d_block(x, weight, bias, gamma, beta, ks=ks, pd=pd, s=s)
    out = jax.block_until_ready(out)

    ref = _reference(x, weight, bias, gamma, beta, ks=ks, pd=pd, s=s)
    assert out.shape == (N, Cout, D, H, W), out.shape
    err = float(jnp.max(jnp.abs(out - ref)))
    assert jnp.allclose(out, ref, rtol=2e-4, atol=2e-4), err

    print("KERNEL_OK")
</pallas_src>

<mosaic_0001>
module attributes {stable_mosaic.version = 11 : i64} {
  func.func @kernel(%arg0: i32, %arg1: memref<1x4x1022xf32, #tpu.memory_space<vmem>>, %arg2: memref<8x108xf32, #tpu.memory_space<vmem>>, %arg3: memref<8x1xf32, #tpu.memory_space<vmem>>, %arg4: memref<8x1xf32, #tpu.memory_space<vmem>>, %arg5: memref<8x1xf32, #tpu.memory_space<vmem>>, %arg6: memref<1x800xf32, #tpu.memory_space<vmem>>, %arg7: memref<1x8x800xf32, #tpu.memory_space<vmem>>, %arg8: memref<108x800xf32, #tpu.memory_space<vmem>>) attributes {dimension_semantics = [#tpu.dimension_semantics<parallel>], iteration_bounds = array<i64: 2>, scalar_prefetch = 0 : i64, scratch_operands = 1 : i64, tpu.core_type = #tpu.core_type<tc>, window_params = [{transform_indices = @transform_0, window_bounds = array<i64: 1, 4, 1022>}, {pipeline_mode = #tpu.pipeline_mode<synchronous>, transform_indices = @transform_1, window_bounds = array<i64: 8, 108>}, {pipeline_mode = #tpu.pipeline_mode<synchronous>, transform_indices = @transform_2, window_bounds = array<i64: 8, 1>}, {pipeline_mode = #tpu.pipeline_mode<synchronous>, transform_indices = @transform_3, window_bounds = array<i64: 8, 1>}, {pipeline_mode = #tpu.pipeline_mode<synchronous>, transform_indices = @transform_4, window_bounds = array<i64: 8, 1>}, {pipeline_mode = #tpu.pipeline_mode<synchronous>, transform_indices = @transform_5, window_bounds = array<i64: 1, 800>}, {transform_indices = @transform_6, window_bounds = array<i64: 1, 8, 800>}]} {
    %c0 = arith.constant 0 : index
    %c0_0 = arith.constant 0 : index
    %c0_1 = arith.constant 0 : index
    %0 = vector.load %arg1[%c0, %c0_0, %c0_1] : memref<1x4x1022xf32, #tpu.memory_space<vmem>>, vector<1x4x800xf32>
    %1 = vector.shape_cast %0 : vector<1x4x800xf32> to vector<4x800xf32>
    %c0_2 = arith.constant 0 : index
    %c0_3 = arith.constant 0 : index
    %2 = vector.load %arg8[%c0_2, %c0_3] : memref<108x800xf32, #tpu.memory_space<vmem>>, vector<4x800xf32>
    tpu.vector_store %arg8[%c0_2, %c0_3], %1 {strides = array<i32>} : memref<108x800xf32, #tpu.memory_space<vmem>>, vector<4x800xf32>,
    %c0_4 = arith.constant 0 : index
    %c0_5 = arith.constant 0 : index
    %c1 = arith.constant 1 : index
    %3 = vector.load %arg1[%c0_4, %c0_5, %c1] : memref<1x4x1022xf32, #tpu.memory_space<vmem>>, vector<1x4x800xf32>
    %4 = vector.shape_cast %3 : vector<1x4x800xf32> to vector<4x800xf32>
    %c4 = arith.constant 4 : index
    %c0_6 = arith.constant 0 : index
    %5 = vector.load %arg8[%c4, %c0_6] : memref<108x800xf32, #tpu.memory_space<vmem>>, vector<4x800xf32>
    tpu.vector_store %arg8[%c4, %c0_6], %4 {strides = array<i32>} : memref<108x800xf32, #tpu.memory_space<vmem>>, vector<4x800xf32>,
    %c0_7 = arith.constant 0 : index
    %c0_8 = arith.constant 0 : index
    %c2 = arith.constant 2 : index
    %6 = vector.load %arg1[%c0_7, %c0_8, %c2] : memref<1x4x1022xf32, #tpu.memory_space<vmem>>, vector<1x4x800xf32>
    %7 = vector.shape_cast %6 : vector<1x4x800xf32> to vector<4x800xf32>
    %c8 = arith.constant 8 : index
    %c0_9 = arith.constant 0 : index
    %8 = vector.load %arg8[%c8, %c0_9] : memref<108x800xf32, #tpu.memory_space<vmem>>, vector<4x800xf32>
    tpu.vector_store %arg8[%c8, %c0_9], %7 {strides = array<i32>} : memref<108x800xf32, #tpu.memory_space<vmem>>, vector<4x800xf32>,
    %c0_10 = arith.constant 0 : index
    %c0_11 = arith.constant 0 : index
    %c10 = arith.constant 10 : index
    %9 = vector.load %arg1[%c0_10, %c0_11, %c10] : memref<1x4x1022xf32, #tpu.memory_space<vmem>>, vector<1x4x800xf32>
    %10 = vector.shape_cast %9 : vector<1x4x800xf32> to vector<4x800xf32>
    %c12 = arith.constant 12 : index
    %c0_12 = arith.constant 0 : index
    %11 = vector.load %arg8[%c12, %c0_12] : memref<108x800xf32, #tpu.memory_space<vmem>>, vector<4x800xf32>
    tpu.vector_store %arg8[%c12, %c0_12], %10 {strides = array<i32>} : memref<108x800xf32, #tpu.memory_space<vmem>>, vector<4x800xf32>,
    %c0_13 = arith.constant 0 : index
    %c0_14 = arith.constant 0 : index
    %c11 = arith.constant 11 : index
    %12 = vector.load %arg1[%c0_13, %c0_14, %c11] : memref<1x4x1022xf32, #tpu.memory_space<vmem>>, vector<1x4x800xf32>
    %13 = vector.shape_cast %12 : vector<1x4x800xf32> to vector<4x800xf32>
    %c16 = arith.constant 16 : index
    %c0_15 = arith.constant 0 : index
    %14 = vector.load %arg8[%c16, %c0_15] : memref<108x800xf32, #tpu.memory_space<vmem>>, vector<4x800xf32>
    tpu.vector_store %arg8[%c16, %c0_15], %13 {strides = array<i32>} : memref<108x800xf32, #tpu.memory_space<vmem>>, vector<4x800xf32>,
    %c0_16 = arith.constant 0 : index
    %c0_17 = arith.constant 0 : index
    %c12_18 = arith.constant 12 : index
    %15 = vector.load %arg1[%c0_16, %c0_17, %c12_18] : memref<1x4x1022xf32, #tpu.memory_space<vmem>>, vector<1x4x800xf32>
    %16 = vector.shape_cast %15 : vector<1x4x800xf32> to vector<4x800xf32>
    %c20 = arith.constant 20 : index
    %c0_19 = arith.constant 0 : index
    %17 = vector.load %arg8[%c20, %c0_19] : memref<108x800xf32, #tpu.memory_space<vmem>>, vector<4x800xf32>
    tpu.vector_store %arg8[%c20, %c0_19], %16 {strides = array<i32>} : memref<108x800xf32, #tpu.memory_space<vmem>>, vector<4x800xf32>,
    %c0_20 = arith.constant 0 : index
    %c0_21 = arith.constant 0 : index
    %c20_22 = arith.constant 20 : index
    %18 = vector.load %arg1[%c0_20, %c0_21, %c20_22] : memref<1x4x1022xf32, #tpu.memory_space<vmem>>, vector<1x4x800xf32>
    %19 = vector.shape_cast %18 : vector<1x4x800xf32> to vector<4x800xf32>
    %c24 = arith.constant 24 : index
    %c0_23 = arith.constant 0 : index
    %20 = vector.load %arg8[%c24, %c0_23] : memref<108x800xf32, #tpu.memory_space<vmem>>, vector<4x800xf32>
    tpu.vector_store %arg8[%c24, %c0_23], %19 {strides = array<i32>} : memref<108x800xf32, #tpu.memory_space<vmem>>, vector<4x800xf32>,
    %c0_24 = arith.constant 0 : index
    %c0_25 = arith.constant 0 : index
    %c21 = arith.constant 21 : index
    %21 = vector.load %arg1[%c0_24, %c0_25, %c21] : memref<1x4x1022xf32, #tpu.memory_space<vmem>>, vector<1x4x800xf32>
    %22 = vector.shape_cast %21 : vector<1x4x800xf32> to vector<4x800xf32>
    %c28 = arith.constant 28 : index
    %c0_26 = arith.constant 0 : index
    %23 = vector.load %arg8[%c28, %c0_26] : memref<108x800xf32, #tpu.memory_space<vmem>>, vector<4x800xf32>
    tpu.vector_store %arg8[%c28, %c0_26], %22 {strides = array<i32>} : memref<108x800xf32, #tpu.memory_space<vmem>>, vector<4x800xf32>,
    %c0_27 = arith.constant 0 : index
    %c0_28 = arith.constant 0 : index
    %c22 = arith.constant 22 : index
    %24 = vector.load %arg1[%c0_27, %c0_28, %c22] : memref<1x4x1022xf32, #tpu.memory_space<vmem>>, vector<1x4x800xf32>
    %25 = vector.shape_cast %24 : vector<1x4x800xf32> to vector<4x800xf32>
    %c32 = arith.constant 32 : index
    %c0_29 = arith.constant 0 : index
    %26 = vector.load %arg8[%c32, %c0_29] : memref<108x800xf32, #tpu.memory_space<vmem>>, vector<4x800xf32>
    tpu.vector_store %arg8[%c32, %c0_29], %25 {strides = array<i32>} : memref<108x800xf32, #tpu.memory_space<vmem>>, vector<4x800xf32>,
    %c0_30 = arith.constant 0 : index
    %c0_31 = arith.constant 0 : index
    %c100 = arith.constant 100 : index
    %27 = vector.load %arg1[%c0_30, %c0_31, %c100] : memref<1x4x1022xf32, #tpu.memory_space<vmem>>, vector<1x4x800xf32>
    %28 = vector.shape_cast %27 : vector<1x4x800xf32> to vector<4x800xf32>
    %c36 = arith.constant 36 : index
    %c0_32 = arith.constant 0 : index
    %29 = vector.load %arg8[%c36, %c0_32] : memref<108x800xf32, #tpu.memory_space<vmem>>, vector<4x800xf32>
    tpu.vector_store %arg8[%c36, %c0_32], %28 {strides = array<i32>} : memref<108x800xf32, #tpu.memory_space<vmem>>, vector<4x800xf32>,
    %c0_33 = arith.constant 0 : index
    %c0_34 = arith.constant 0 : index
    %c101 = arith.constant 101 : index
    %30 = vector.load %arg1[%c0_33, %c0_34, %c101] : memref<1x4x1022xf32, #tpu.memory_space<vmem>>, vector<1x4x800xf32>
    %31 = vector.shape_cast %30 : vector<1x4x800xf32> to vector<4x800xf32>
    %c40 = arith.constant 40 : index
    %c0_35 = arith.constant 0 : index
    %32 = vector.load %arg8[%c40, %c0_35] : memref<108x800xf32, #tpu.memory_space<vmem>>, vector<4x800xf32>
    tpu.vector_store %arg8[%c40, %c0_35], %31 {strides = array<i32>} : memref<108x800xf32, #tpu.memory_space<vmem>>, vector<4x800xf32>,
    %c0_36 = arith.constant 0 : index
    %c0_37 = arith.constant 0 : index
    %c102 = arith.constant 102 : index
    %33 = vector.load %arg1[%c0_36, %c0_37, %c102] : memref<1x4x1022xf32, #tpu.memory_space<vmem>>, vector<1x4x800xf32>
    %34 = vector.shape_cast %33 : vector<1x4x800xf32> to vector<4x800xf32>
    %c44 = arith.constant 44 : index
    %c0_38 = arith.constant 0 : index
    %35 = vector.load %arg8[%c44, %c0_38] : memref<108x800xf32, #tpu.memory_space<vmem>>, vector<4x800xf32>
    tpu.vector_store %arg8[%c44, %c0_38], %34 {strides = array<i32>} : memref<108x800xf32, #tpu.memory_space<vmem>>, vector<4x800xf32>,
    %c0_39 = arith.constant 0 : index
    %c0_40 = arith.constant 0 : index
    %c110 = arith.constant 110 : index
    %36 = vector.load %arg1[%c0_39, %c0_40, %c110] : memref<1x4x1022xf32, #tpu.memory_space<vmem>>, vector<1x4x800xf32>
    %37 = vector.shape_cast %36 : vector<1x4x800xf32> to vector<4x800xf32>
    %c48 = arith.constant 48 : index
    %c0_41 = arith.constant 0 : index
    %38 = vector.load %arg8[%c48, %c0_41] : memref<108x800xf32, #tpu.memory_space<vmem>>, vector<4x800xf32>
    tpu.vector_store %arg8[%c48, %c0_41], %37 {strides = array<i32>} : memref<108x800xf32, #tpu.memory_space<vmem>>, vector<4x800xf32>,
    %c0_42 = arith.constant 0 : index
    %c0_43 = arith.constant 0 : index
    %c111 = arith.constant 111 : index
    %39 = vector.load %arg1[%c0_42, %c0_43, %c111] : memref<1x4x1022xf32, #tpu.memory_space<vmem>>, vector<1x4x800xf32>
    %40 = vector.shape_cast %39 : vector<1x4x800xf32> to vector<4x800xf32>
    %c52 = arith.constant 52 : index
    %c0_44 = arith.constant 0 : index
    %41 = vector.load %arg8[%c52, %c0_44] : memref<108x800xf32, #tpu.memory_space<vmem>>, vector<4x800xf32>
    tpu.vector_store %arg8[%c52, %c0_44], %40 {strides = array<i32>} : memref<108x800xf32, #tpu.memory_space<vmem>>, vector<4x800xf32>,
    %c0_45 = arith.constant 0 : index
    %c0_46 = arith.constant 0 : index
    %c112 = arith.constant 112 : index
    %42 = vector.load %arg1[%c0_45, %c0_46, %c112] : memref<1x4x1022xf32, #tpu.memory_space<vmem>>, vector<1x4x800xf32>
    %43 = vector.shape_cast %42 : vector<1x4x800xf32> to vector<4x800xf32>
    %c56 = arith.constant 56 : index
    %c0_47 = arith.constant 0 : index
    %44 = vector.load %arg8[%c56, %c0_47] : memref<108x800xf32, #tpu.memory_space<vmem>>, vector<4x800xf32>
    tpu.vector_store %arg8[%c56, %c0_47], %43 {strides = array<i32>} : memref<108x800xf32, #tpu.memory_space<vmem>>, vector<4x800xf32>,
    %c0_48 = arith.constant 0 : index
    %c0_49 = arith.constant 0 : index
    %c120 = arith.constant 120 : index
    %45 = vector.load %arg1[%c0_48, %c0_49, %c120] : memref<1x4x1022xf32, #tpu.memory_space<vmem>>, vector<1x4x800xf32>
    %46 = vector.shape_cast %45 : vector<1x4x800xf32> to vector<4x800xf32>
    %c60 = arith.constant 60 : index
    %c0_50 = arith.constant 0 : index
    %47 = vector.load %arg8[%c60, %c0_50] : memref<108x800xf32, #tpu.memory_space<vmem>>, vector<4x800xf32>
    tpu.vector_store %arg8[%c60, %c0_50], %46 {strides = array<i32>} : memref<108x800xf32, #tpu.memory_space<vmem>>, vector<4x800xf32>,
    %c0_51 = arith.constant 0 : index
    %c0_52 = arith.constant 0 : index
    %c121 = arith.constant 121 : index
    %48 = vector.load %arg1[%c0_51, %c0_52, %c121] : memref<1x4x1022xf32, #tpu.memory_space<vmem>>, vector<1x4x800xf32>
    %49 = vector.shape_cast %48 : vector<1x4x800xf32> to vector<4x800xf32>
    %c64 = arith.constant 64 : index
    %c0_53 = arith.constant 0 : index
    %50 = vector.load %arg8[%c64, %c0_53] : memref<108x800xf32, #tpu.memory_space<vmem>>, vector<4x800xf32>
    tpu.vector_store %arg8[%c64, %c0_53], %49 {strides = array<i32>} : memref<108x800xf32, #tpu.memory_space<vmem>>, vector<4x800xf32>,
    %c0_54 = arith.constant 0 : index
    %c0_55 = arith.constant 0 : index
    %c122 = arith.constant 122 : index
    %51 = vector.load %arg1[%c0_54, %c0_55, %c122] : memref<1x4x1022xf32, #tpu.memory_space<vmem>>, vector<1x4x800xf32>
    %52 = vector.shape_cast %51 : vector<1x4x800xf32> to vector<4x800xf32>
    %c68 = arith.constant 68 : index
    %c0_56 = arith.constant 0 : index
    %53 = vector.load %arg8[%c68, %c0_56] : memref<108x800xf32, #tpu.memory_space<vmem>>, vector<4x800xf32>
    tpu.vector_store %arg8[%c68, %c0_56], %52 {strides = array<i32>} : memref<108x800xf32, #tpu.memory_space<vmem>>, vector<4x800xf32>,
    %c0_57 = arith.constant 0 : index
    %c0_58 = arith.constant 0 : index
    %c200 = arith.constant 200 : index
    %54 = vector.load %arg1[%c0_57, %c0_58, %c200] : memref<1x4x1022xf32, #tpu.memory_space<vmem>>, vector<1x4x800xf32>
    %55 = vector.shape_cast %54 : vector<1x4x800xf32> to vector<4x800xf32>
    %c72 = arith.constant 72 : index
    %c0_59 = arith.constant 0 : index
    %56 = vector.load %arg8[%c72, %c0_59] : memref<108x800xf32, #tpu.memory_space<vmem>>, vector<4x800xf32>
    tpu.vector_store %arg8[%c72, %c0_59], %55 {strides = array<i32>} : memref<108x800xf32, #tpu.memory_space<vmem>>, vector<4x800xf32>,
    %c0_60 = arith.constant 0 : index
    %c0_61 = arith.constant 0 : index
    %c201 = arith.constant 201 : index
    %57 = vector.load %arg1[%c0_60, %c0_61, %c201] : memref<1x4x1022xf32, #tpu.memory_space<vmem>>, vector<1x4x800xf32>
    %58 = vector.shape_cast %57 : vector<1x4x800xf32> to vector<4x800xf32>
    %c76 = arith.constant 76 : index
    %c0_62 = arith.constant 0 : index
    %59 = vector.load %arg8[%c76, %c0_62] : memref<108x800xf32, #tpu.memory_space<vmem>>, vector<4x800xf32>
    tpu.vector_store %arg8[%c76, %c0_62], %58 {strides = array<i32>} : memref<108x800xf32, #tpu.memory_space<vmem>>, vector<4x800xf32>,
    %c0_63 = arith.constant 0 : index
    %c0_64 = arith.constant 0 : index
    %c202 = arith.constant 202 : index
    %60 = vector.load %arg1[%c0_63, %c0_64, %c202] : memref<1x4x1022xf32, #tpu.memory_space<vmem>>, vector<1x4x800xf32>
    %61 = vector.shape_cast %60 : vector<1x4x800xf32> to vector<4x800xf32>
    %c80 = arith.constant 80 : index
    %c0_65 = arith.constant 0 : index
    %62 = vector.load %arg8[%c80, %c0_65] : memref<108x800xf32, #tpu.memory_space<vmem>>, vector<4x800xf32>
    tpu.vector_store %arg8[%c80, %c0_65], %61 {strides = array<i32>} : memref<108x800xf32, #tpu.memory_space<vmem>>, vector<4x800xf32>,
    %c0_66 = arith.constant 0 : index
    %c0_67 = arith.constant 0 : index
    %c210 = arith.constant 210 : index
    %63 = vector.load %arg1[%c0_66, %c0_67, %c210] : memref<1x4x1022xf32, #tpu.memory_space<vmem>>, vector<1x4x800xf32>
    %64 = vector.shape_cast %63 : vector<1x4x800xf32> to vector<4x800xf32>
    %c84 = arith.constant 84 : index
    %c0_68 = arith.constant 0 : index
    %65 = vector.load %arg8[%c84, %c0_68] : memref<108x800xf32, #tpu.memory_space<vmem>>, vector<4x800xf32>
    tpu.vector_store %arg8[%c84, %c0_68], %64 {strides = array<i32>} : memref<108x800xf32, #tpu.memory_space<vmem>>, vector<4x800xf32>,
    %c0_69 = arith.constant 0 : index
    %c0_70 = arith.constant 0 : index
    %c211 = arith.constant 211 : index
    %66 = vector.load %arg1[%c0_69, %c0_70, %c211] : memref<1x4x1022xf32, #tpu.memory_space<vmem>>, vector<1x4x800xf32>
    %67 = vector.shape_cast %66 : vector<1x4x800xf32> to vector<4x800xf32>
    %c88 = arith.constant 88 : index
    %c0_71 = arith.constant 0 : index
    %68 = vector.load %arg8[%c88, %c0_71] : memref<108x800xf32, #tpu.memory_space<vmem>>, vector<4x800xf32>
    tpu.vector_store %arg8[%c88, %c0_71], %67 {strides = array<i32>} : memref<108x800xf32, #tpu.memory_space<vmem>>, vector<4x800xf32>,
    %c0_72 = arith.constant 0 : index
    %c0_73 = arith.constant 0 : index
    %c212 = arith.constant 212 : index
    %69 = vector.load %arg1[%c0_72, %c0_73, %c212] : memref<1x4x1022xf32, #tpu.memory_space<vmem>>, vector<1x4x800xf32>
    %70 = vector.shape_cast %69 : vector<1x4x800xf32> to vector<4x800xf32>
    %c92 = arith.constant 92 : index
    %c0_74 = arith.constant 0 : index
    %71 = vector.load %arg8[%c92, %c0_74] : memref<108x800xf32, #tpu.memory_space<vmem>>, vector<4x800xf32>
    tpu.vector_store %arg8[%c92, %c0_74], %70 {strides = array<i32>} : memref<108x800xf32, #tpu.memory_space<vmem>>, vector<4x800xf32>,
    %c0_75 = arith.constant 0 : index
    %c0_76 = arith.constant 0 : index
    %c220 = arith.constant 220 : index
    %72 = vector.load %arg1[%c0_75, %c0_76, %c220] : memref<1x4x1022xf32, #tpu.memory_space<vmem>>, vector<1x4x800xf32>
    %73 = vector.shape_cast %72 : vector<1x4x800xf32> to vector<4x800xf32>
    %c96 = arith.constant 96 : index
    %c0_77 = arith.constant 0 : index
    %74 = vector.load %arg8[%c96, %c0_77] : memref<108x800xf32, #tpu.memory_space<vmem>>, vector<4x800xf32>
    tpu.vector_store %arg8[%c96, %c0_77], %73 {strides = array<i32>} : memref<108x800xf32, #tpu.memory_space<vmem>>, vector<4x800xf32>,
    %c0_78 = arith.constant 0 : index
    %c0_79 = arith.constant 0 : index
    %c221 = arith.constant 221 : index
    %75 = vector.load %arg1[%c0_78, %c0_79, %c221] : memref<1x4x1022xf32, #tpu.memory_space<vmem>>, vector<1x4x800xf32>
    %76 = vector.shape_cast %75 : vector<1x4x800xf32> to vector<4x800xf32>
    %c100_80 = arith.constant 100 : index
    %c0_81 = arith.constant 0 : index
    %77 = vector.load %arg8[%c100_80, %c0_81] : memref<108x800xf32, #tpu.memory_space<vmem>>, vector<4x800xf32>
    tpu.vector_store %arg8[%c100_80, %c0_81], %76 {strides = array<i32>} : memref<108x800xf32, #tpu.memory_space<vmem>>, vector<4x800xf32>,
    %c0_82 = arith.constant 0 : index
    %c0_83 = arith.constant 0 : index
    %c222 = arith.constant 222 : index
    %78 = vector.load %arg1[%c0_82, %c0_83, %c222] : memref<1x4x1022xf32, #tpu.memory_space<vmem>>, vector<1x4x800xf32>
    %79 = vector.shape_cast %78 : vector<1x4x800xf32> to vector<4x800xf32>
    %c104 = arith.constant 104 : index
    %c0_84 = arith.constant 0 : index
    %80 = vector.load %arg8[%c104, %c0_84] : memref<108x800xf32, #tpu.memory_space<vmem>>, vector<4x800xf32>
    tpu.vector_store %arg8[%c104, %c0_84], %79 {strides = array<i32>} : memref<108x800xf32, #tpu.memory_space<vmem>>, vector<4x800xf32>,
    %c0_85 = arith.constant 0 : index
    %c0_86 = arith.constant 0 : index
    %81 = vector.load %arg2[%c0_85, %c0_86] : memref<8x108xf32, #tpu.memory_space<vmem>>, vector<8x108xf32>
    %c0_87 = arith.constant 0 : index
    %c0_88 = arith.constant 0 : index
    %82 = vector.load %arg8[%c0_87, %c0_88] : memref<108x800xf32, #tpu.memory_space<vmem>>, vector<108x800xf32>
    %cst = arith.constant dense<0.000000e+00> : vector<8x800xf32>
    %83 = tpu.matmul %81, %82, %cst {dimension_numbers = #tpu.dot_dimension_numbers<[1], [0], [0], [1], [0, 0, 1, 1], [], []>} : vector<8x108xf32>, vector<108x800xf32>, vector<8x800xf32> -> vector<8x800xf32>
    %c0_89 = arith.constant 0 : index
    %c0_90 = arith.constant 0 : index
    %84 = vector.load %arg3[%c0_89, %c0_90] : memref<8x1xf32, #tpu.memory_space<vmem>>, vector<8x1xf32>
    %85 = vector.broadcast %84 : vector<8x1xf32> to vector<8x800xf32>
    %86 = arith.addf %83, %85 : vector<8x800xf32>
    %cst_91 = arith.constant 0.000000e+00 : f32
    %87 = vector.broadcast %cst_91 : f32 to vector<8x800xf32>
    %88 = arith.maximumf %86, %87 : vector<8x800xf32>
    %c0_92 = arith.constant 0 : index
    %c0_93 = arith.constant 0 : index
    %89 = vector.load %arg6[%c0_92, %c0_93] : memref<1x800xf32, #tpu.memory_space<vmem>>, vector<1x800xf32>
    %90 = vector.broadcast %89 : vector<1x800xf32> to vector<8x800xf32>
    %91 = arith.mulf %88, %90 : vector<8x800xf32>
    %92 = vector.shape_cast %91 : vector<8x800xf32> to vector<1x8x800xf32>
    %cst_94 = arith.constant dense<0.000000e+00> : vector<1xf32>
    %93 = vector.multi_reduction <add>, %92, %cst_94 [1, 2] : vector<1x8x800xf32> to vector<1xf32>
    %94 = vector.shape_cast %93 : vector<1xf32> to vector<1x1x1xf32>
    %95 = vector.extract %94[0, 0, 0] : f32 from vector<1x1x1xf32>
    %cst_95 = arith.constant 4.096000e+03 : f32
    %96 = arith.divf %95, %cst_95 : f32
    %97 = vector.broadcast %96 : f32 to vector<8x800xf32>
    %98 = arith.subf %88, %97 : vector<8x800xf32>
    %99 = vector.broadcast %89 : vector<1x800xf32> to vector<8x800xf32>
    %100 = arith.mulf %98, %99 : vector<8x800xf32>
    %101 = arith.mulf %100, %100 : vector<8x800xf32>
    %102 = vector.shape_cast %101 : vector<8x800xf32> to vector<1x8x800xf32>
    %cst_96 = arith.constant dense<0.000000e+00> : vector<1xf32>
    %103 = vector.multi_reduction <add>, %102, %cst_96 [1, 2] : vector<1x8x800xf32> to vector<1xf32>
    %104 = vector.shape_cast %103 : vector<1xf32> to vector<1x1x1xf32>
    %105 = vector.extract %104[0, 0, 0] : f32 from vector<1x1x1xf32>
    %cst_97 = arith.constant 4.096000e+03 : f32
    %106 = arith.divf %105, %cst_97 : f32
    %cst_98 = arith.constant 9.99999974E-6 : f32
    %107 = arith.addf %106, %cst_98 : f32
    %108 = math.rsqrt %107 : f32
    %109 = vector.broadcast %108 : f32 to vector<8x800xf32>
    %110 = arith.mulf %100, %109 : vector<8x800xf32>
    %c0_99 = arith.constant 0 : index
    %c0_100 = arith.constant 0 : index
    %111 = vector.load %arg4[%c0_99, %c0_100] : memref<8x1xf32, #tpu.memory_space<vmem>>, vector<8x1xf32>
    %112 = vector.broadcast %111 : vector<8x1xf32> to vector<8x800xf32>
    %113 = arith.mulf %110, %112 : vector<8x800xf32>
    %c0_101 = arith.constant 0 : index
    %c0_102 = arith.constant 0 : index
    %114 = vector.load %arg5[%c0_101, %c0_102] : memref<8x1xf32, #tpu.memory_space<vmem>>, vector<8x1xf32>
    %115 = vector.broadcast %114 : vector<8x1xf32> to vector<8x800xf32>
    %116 = arith.addf %113, %115 : vector<8x800xf32>
    %c0_103 = arith.constant 0 : index
    %c0_104 = arith.constant 0 : index
    %c0_105 = arith.constant 0 : index
    %117 = vector.load %arg7[%c0_103, %c0_104, %c0_105] : memref<1x8x800xf32, #tpu.memory_space<vmem>>, vector<1x8x800xf32>
    %118 = vector.shape_cast %117 : vector<1x8x800xf32> to vector<8x800xf32>
    %119 = vector.shape_cast %116 : vector<8x800xf32> to vector<1x8x800xf32>
    tpu.vector_store %arg7[%c0_103, %c0_104, %c0_105], %119 {strides = array<i32>} : memref<1x8x800xf32, #tpu.memory_space<vmem>>, vector<1x8x800xf32>,
    return
  }
  func.func @transform_0(%arg0: i32) -> (i32, i32, i32) {
    %c0_i32 = arith.constant 0 : i32
    %c0_i32_0 = arith.constant 0 : i32
    %c0_i32_1 = arith.constant 0 : i32
    return %arg0, %c0_i32, %c0_i32_0 : i32, i32, i32
  }
  func.func @transform_1(%arg0: i32) -> (i32, i32) {
    %c0_i32 = arith.constant 0 : i32
    %c0_i32_0 = arith.constant 0 : i32
    %c0_i32_1 = arith.constant 0 : i32
    return %c0_i32, %c0_i32_0 : i32, i32
  }
  func.func @transform_2(%arg0: i32) -> (i32, i32) {
    %c0_i32 = arith.constant 0 : i32
    %c0_i32_0 = arith.constant 0 : i32
    %c0_i32_1 = arith.constant 0 : i32
    return %c0_i32, %c0_i32_0 : i32, i32
  }
  func.func @transform_3(%arg0: i32) -> (i32, i32) {
    %c0_i32 = arith.constant 0 : i32
    %c0_i32_0 = arith.constant 0 : i32
    %c0_i32_1 = arith.constant 0 : i32
    return %c0_i32, %c0_i32_0 : i32, i32
  }
  func.func @transform_4(%arg0: i32) -> (i32, i32) {
    %c0_i32 = arith.constant 0 : i32
    %c0_i32_0 = arith.constant 0 : i32
    %c0_i32_1 = arith.constant 0 : i32
    return %c0_i32, %c0_i32_0 : i32, i32
  }
  func.func @transform_5(%arg0: i32) -> (i32, i32) {
    %c0_i32 = arith.constant 0 : i32
    %c0_i32_0 = arith.constant 0 : i32
    %c0_i32_1 = arith.constant 0 : i32
    return %c0_i32, %c0_i32_0 : i32, i32
  }
  func.func @transform_6(%arg0: i32) -> (i32, i32, i32) {
    %c0_i32 = arith.constant 0 : i32
    %c0_i32_0 = arith.constant 0 : i32
    %c0_i32_1 = arith.constant 0 : i32
    return %arg0, %c0_i32, %c0_i32_0 : i32, i32, i32
  }
}

</mosaic_0001>

<llo_original>
// kernel: tpu_custom_call.1
$region0: #{tpu_custom_call.1}
  #allocation0 [shape = 'u32[]', space=smem, size = 0x4, offset = 0x4, fixed_abs, tag = 'smem constant byte address 0x4 - core index']
  #allocation1 [shape = 'u32[144,128]{1,0:T(1,128)}', space=vmem, size = 0x12000, scoped, tag = 'internal scratch']
  #allocation2 [shape = 'f32[108,800]{1,0:T(8,128)}', space=vmem, size = 0x62000, scoped, tag = 'scratch operand']
  %s0 = inlined_call_operand.hbm [shape: f32[2,4,1022], index: 0, kind: input, shape index: {}]
  %s1 = inlined_call_operand.vmem [shape: f32[8,108], index: 1, kind: input, shape index: {}]
  %s2 = inlined_call_operand.vmem [shape: f32[8,1], index: 2, kind: input, shape index: {}]
  %s3 = inlined_call_operand.vmem [shape: f32[8,1], index: 3, kind: input, shape index: {}]
  %s4 = inlined_call_operand.vmem [shape: f32[8,1], index: 4, kind: input, shape index: {}]
  %s5 = inlined_call_operand.vmem [shape: f32[1,800], index: 5, kind: input, shape index: {}]
  %s6 = inlined_call_operand.hbm [shape: f32[2,8,800], index: 6, kind: output, shape index: {}]
  %s7 = sld [smem:[#allocation0]]
  $region61: #{tpu_custom_call.1} parent=0
    _
  %s9 = ssub.s32 1, %s7
  %s10 = scalar_select 0, %s9, %s7
  $region1: #{tpu_custom_call.1} parent=0
    #allocation3 [shape = 'u8[32768]{0}', space=vmem, size = 0x8000, scoped, tag = 'input window, operand 0']
    #allocation4 [shape = 's32[2]{0}', space=sflag, size = 0x8, scoped, tag = 'scoped memory for tpu_custom_call.1']
    #allocation5 [shape = 's32[2]{0}', space=sflag, size = 0x8, scoped, tag = 'scoped memory for tpu_custom_call.1']
    #allocation6 [shape = 'u8[57344]{0}', space=vmem, size = 0xe000, scoped, tag = 'output window, operand 0']
    %11 = vsyncpa [#allocation4], 0
    %s12 = scalar_lea.sflag [#allocation4], 1
    %13 = vsyncpa %s12, 0
    %14 = vsyncpa [#allocation5], 0
    %s15 = scalar_lea.sflag [#allocation5], 1
    %16 = vsyncpa %s15, 0
    loop: start=0, step=1, limit=4
    $region2: #{tpu_custom_call.1} parent=1 // loop_pre_header
      _
    $region3: #{tpu_custom_call.1} parent=1 // loop_header
      %s18 = sphi 0, %s22
      %p19 = scmp.ge.s32.totalorder %s18, 4
      %s28 = sphi 0, %s30
      %s31 = sphi 0, %s28
      %s32 = sphi 0, %s31
      %s48 = sphi 0, %s32
      %s52 = sphi 0, %s52
      %s54 = sphi 0, %s52
      %s55 = sphi 0, %s54
      %s69 = sphi 0, %s55
      %s73 = sphi 0, %s73
      %s75 = sphi 0, %s73
      %s76 = sphi 0, %s75
      %s90 = sphi 0, %s76
      %s94 = sphi 0, %s94
      %s96 = sphi 0, %s94
      %s97 = sphi 0, %s96
      %s111 = sphi 0, %s97
      %s115 = sphi 0, %s115
      %s117 = sphi 0, %s115
      %s118 = sphi 0, %s117
      %s132 = sphi 0, %s118
      %s136 = sphi 0, %s136
      %s138 = sphi 0, %s136
      %s139 = sphi 0, %s138
      %s153 = sphi 0, %s139
      %s159 = sphi 0, %s161
      %s162 = sphi 0, %s159
      %s163 = sphi 0, %s162
      %s179 = sphi 0, %s163
    $region4: #{tpu_custom_call.1} parent=1 // loop_header_branch
      %21 = sbr.rel (%p19) target = $region8
    $region5: #{tpu_custom_call.1} parent=1 // loop_body
      %s23 = ssub.s32 %s18, 1
      %s24 = ssub.s32 %s18, 2
      %s25 = sadd.s32 %s18, 1
      %s26 = ssub.s32 %s18, %s25
      %p27 = scmp.eq.s32.totalorder %s26, 0
      %s29 = sadd.s32 %s28, 1
      %s30 = scalar_select %p27, %s28, %s29
      %p33 = pneg %p27
      %p34 = scmp.eq.s32.totalorder %s18, 1
      %p35 = por %p33, %p34
      %p36 = scmp.ne.s32.totalorder %s28, %s31
      %p37 = scmp.eq.s32.totalorder %s18, 0
      %p38 = por %p36, %p37
      %p39 = scmp.ne.s32.totalorder %s28, %s31
      %p40 = scmp.eq.s32.totalorder %s23, 1
      %p41 = por %p39, %p40
      %p42 = scmp.ne.s32.totalorder %s31, %s32
      %p43 = scmp.eq.s32.totalorder %s23, 0
      %p44 = por %p42, %p43
      %p45 = scmp.ne.s32.totalorder %s31, %s32
      %p46 = scmp.eq.s32.totalorder %s24, 1
      %p47 = por %p45, %p46
      %p49 = scmp.ne.s32.totalorder %s32, %s48
      %p50 = scmp.eq.s32.totalorder %s24, 0
      %p51 = por %p49, %p50
      %s53 = sadd.s32 %s52, 1
      %p56 = scmp.eq.s32.totalorder %s18, 1
      %p57 = scmp.ne.s32.totalorder %s52, %s54
      %p58 = scmp.eq.s32.totalorder %s18, 0
      %p59 = por %p57, %p58
      %p60 = scmp.ne.s32.totalorder %s52, %s54
      %p61 = scmp.eq.s32.totalorder %s23, 1
      %p62 = por %p60, %p61
      %p63 = scmp.ne.s32.totalorder %s54, %s55
      %p64 = scmp.eq.s32.totalorder %s23, 0
      %p65 = por %p63, %p64
      %p66 = scmp.ne.s32.totalorder %s54, %s55
      %p67 = scmp.eq.s32.totalorder %s24, 1
      %p68 = por %p66, %p67
      %p70 = scmp.ne.s32.totalorder %s55, %s69
      %p71 = scmp.eq.s32.totalorder %s24, 0
      %p72 = por %p70, %p71
      %s74 = sadd.s32 %s73, 1
      %p77 = scmp.eq.s32.totalorder %s18, 1
      %p78 = scmp.ne.s32.totalorder %s73, %s75
      %p79 = scmp.eq.s32.totalorder %s18, 0
      %p80 = por %p78, %p79
      %p81 = scmp.ne.s32.totalorder %s73, %s75
      %p82 = scmp.eq.s32.totalorder %s23, 1
      %p83 = por %p81, %p82
      %p84 = scmp.ne.s32.totalorder %s75, %s76
      %p85 = scmp.eq.s32.totalorder %s23, 0
      %p86 = por %p84, %p85
      %p87 = scmp.ne.s32.totalorder %s75, %s76
      %p88 = scmp.eq.s32.totalorder %s24, 1
      %p89 = por %p87, %p88
      %p91 = scmp.ne.s32.totalorder %s76, %s90
      %p92 = scmp.eq.s32.totalorder %s24, 0
      %p93 = por %p91, %p92
      %s95 = sadd.s32 %s94, 1
      %p98 = scmp.eq.s32.totalorder %s18, 1
      %p99 = scmp.ne.s32.totalorder %s94, %s96
      %p100 = scmp.eq.s32.totalorder %s18, 0
      %p101 = por %p99, %p100
      %p102 = scmp.ne.s32.totalorder %s94, %s96
      %p103 = scmp.eq.s32.totalorder %s23, 1
      %p104 = por %p102, %p103
      %p105 = scmp.ne.s32.totalorder %s96, %s97
      %p106 = scmp.eq.s32.totalorder %s23, 0
      %p107 = por %p105, %p106
      %p108 = scmp.ne.s32.totalorder %s96, %s97
      %p109 = scmp.eq.s32.totalorder %s24, 1
      %p110 = por %p108, %p109
      %p112 = scmp.ne.s32.totalorder %s97, %s111
      %p113 = scmp.eq.s32.totalorder %s24, 0
      %p114 = por %p112, %p113
      %s116 = sadd.s32 %s115, 1
      %p119 = scmp.eq.s32.totalorder %s18, 1
      %p120 = scmp.ne.s32.totalorder %s115, %s117
      %p121 = scmp.eq.s32.totalorder %s18, 0
      %p122 = por %p120, %p121
      %p123 = scmp.ne.s32.totalorder %s115, %s117
      %p124 = scmp.eq.s32.totalorder %s23, 1
      %p125 = por %p123, %p124
      %p126 = scmp.ne.s32.totalorder %s117, %s118
      %p127 = scmp.eq.s32.totalorder %s23, 0
      %p128 = por %p126, %p127
      %p129 = scmp.ne.s32.totalorder %s117, %s118
      %p130 = scmp.eq.s32.totalorder %s24, 1
      %p131 = por %p129, %p130
      %p133 = scmp.ne.s32.totalorder %s118, %s132
      %p134 = scmp.eq.s32.totalorder %s24, 0
      %p135 = por %p133, %p134
      %s137 = sadd.s32 %s136, 1
      %p140 = scmp.eq.s32.totalorder %s18, 1
      %p141 = scmp.ne.s32.totalorder %s136, %s138
      %p142 = scmp.eq.s32.totalorder %s18, 0
      %p143 = por %p141, %p142
      %p144 = scmp.ne.s32.totalorder %s136, %s138
      %p145 = scmp.eq.s32.totalorder %s23, 1
      %p146 = por %p144, %p145
      %p147 = scmp.ne.s32.totalorder %s138, %s139
      %p148 = scmp.eq.s32.totalorder %s23, 0
      %p149 = por %p147, %p148
      %p150 = scmp.ne.s32.totalorder %s138, %s139
      %p151 = scmp.eq.s32.totalorder %s24, 1
      %p152 = por %p150, %p151
      %p154 = scmp.ne.s32.totalorder %s139, %s153
      %p155 = scmp.eq.s32.totalorder %s24, 0
      %p156 = por %p154, %p155
      %s157 = ssub.s32 %s18, %s25
      %p158 = scmp.eq.s32.totalorder %s157, 0
      %s160 = sadd.s32 %s159, 1
      %s161 = scalar_select %p158, %s159, %s160
      %p164 = pneg %p158
      %p165 = scmp.eq.s32.totalorder %s18, 1
      %p166 = por %p164, %p165
      %p167 = scmp.ne.s32.totalorder %s159, %s162
      %p168 = scmp.eq.s32.totalorder %s18, 0
      %p169 = por %p167, %p168
      %p170 = scmp.ne.s32.totalorder %s159, %s162
      %p171 = scmp.eq.s32.totalorder %s23, 1
      %p172 = por %p170, %p171
      %p173 = scmp.ne.s32.totalorder %s162, %s163
      %p174 = scmp.eq.s32.totalorder %s23, 0
      %p175 = por %p173, %p174
      %p176 = scmp.ne.s32.totalorder %s162, %s163
      %p177 = scmp.eq.s32.totalorder %s24, 1
      %p178 = por %p176, %p177
      %p180 = scmp.ne.s32.totalorder %s163, %s179
      %p181 = scmp.eq.s32.totalorder %s24, 0
      %p182 = por %p180, %p181
      %p183 = scmp.le.s32.totalorder 1, %s18
      %p184 = scmp.lt.s32.totalorder %s18, 3
      %p185 = pnand %p183, %p184
      %p186 = pneg %p185
      // Predicated region
      $region9: #{tpu_custom_call.1} parent=5 // pred_check
        _
      $region10: #{tpu_custom_call.1} parent=5 // pred_check_branch
        %188 = sbr.rel (%p185) target = $region12
      $region11: #{tpu_custom_call.1} parent=5 // pred_region
        %s189 = ssub.s32 %s18, 1
        // Predicated region
        $region13: #{tpu_custom_call.1} parent=11 // pred_check
          %p190 = pneg %p65
        $region14: #{tpu_custom_call.1} parent=11 // pred_check_branch
          %192 = sbr.rel (%p190) target = $region16
        $region15: #{tpu_custom_call.1} parent=11 // pred_region
          _
        $region16: #{tpu_custom_call.1} parent=11 // pred_fallthru
          _
        // Predicated region
        $region17: #{tpu_custom_call.1} parent=11 // pred_check
          %p193 = pneg %p86
        $region18: #{tpu_custom_call.1} parent=11 // pred_check_branch
          %195 = sbr.rel (%p193) target = $region20
        $region19: #{tpu_custom_call.1} parent=11 // pred_region
          _
        $region20: #{tpu_custom_call.1} parent=11 // pred_fallthru
          _
        // Predicated region
        $region21: #{tpu_custom_call.1} parent=11 // pred_check
          %p196 = pneg %p107
        $region22: #{tpu_custom_call.1} parent=11 // pred_check_branch
          %198 = sbr.rel (%p196) target = $region24
        $region23: #{tpu_custom_call.1} parent=11 // pred_region
          _
        $region24: #{tpu_custom_call.1} parent=11 // pred_fallthru
          _
        // Predicated region
        $region25: #{tpu_custom_call.1} parent=11 // pred_check
          %p199 = pneg %p128
        $region26: #{tpu_custom_call.1} parent=11 // pred_check_branch
          %201 = sbr.rel (%p199) target = $region28
        $region27: #{tpu_custom_call.1} parent=11 // pred_region
          _
        $region28: #{tpu_custom_call.1} parent=11 // pred_fallthru
          _
        // Predicated region
        $region29: #{tpu_custom_call.1} parent=11 // pred_check
          %p202 = pneg %p149
        $region30: #{tpu_custom_call.1} parent=11 // pred_check_branch
          %204 = sbr.rel (%p202) target = $region32
        $region31: #{tpu_custom_call.1} parent=11 // pred_region
          _
        $region32: #{tpu_custom_call.1} parent=11 // pred_fallthru
          _
      $region12: #{tpu_custom_call.1} parent=5 // pred_fallthru
        _
      %p205 = scmp.lt.s32.totalorder %s18, 2
      // Predicated region
      $region33: #{tpu_custom_call.1} parent=5 // pred_check
        %p206 = pneg %p205
      $region34: #{tpu_custom_call.1} parent=5 // pred_check_branch
        %208 = sbr.rel (%p206) target = $region36
      $region35: #{tpu_custom_call.1} parent=5 // pred_region
        // Predicated region
        $region37: #{tpu_custom_call.1} parent=35 // pred_check
          %p209 = pneg %p38
        $region38: #{tpu_custom_call.1} parent=35 // pred_check_branch
          %211 = sbr.rel (%p209) target = $region40
        $region39: #{tpu_custom_call.1} parent=35 // pred_region
          %s212 = sand.u32 %s28, 1
          %s213 = scalar_lea.sflag [#allocation4], %s212
          %s214 = sand.u32 %s28, 1
          %s215 = smul.addr %s214, 32
          %s216 = scalar_lea.vmem [#allocation3], %s215
          %s218 = ssub.s32 512, 512
          %219 = vsyncadd %s213, %s218
          %s220 = smul.addr %s18, 8
          %s221 = smul.addr %s220, 64
          %s222 = scalar_lea.hbm %s0, %s221
          %s224 = sshll.u32 %s216, 4
          %s225 = int_to_ptr.vmem [resolvable:$true] %s224
          %227 = dma.hbm_to_vmem [thread:$0]  %s222, 512, %s225, %s213
        $region40: #{tpu_custom_call.1} parent=35 // pred_fallthru
          _
      $region36: #{tpu_custom_call.1} parent=5 // pred_fallthru
        _
      %p228 = scmp.le.s32.totalorder 1, %s18
      %p229 = scmp.lt.s32.totalorder %s18, 3
      %p230 = pnand %p228, %p229
      %p231 = pneg %p230
      // Predicated region
      $region41: #{tpu_custom_call.1} parent=5 // pred_check
        _
      $region42: #{tpu_custom_call.1} parent=5 // pred_check_branch
        %233 = sbr.rel (%p230) target = $region44
      $region43: #{tpu_custom_call.1} parent=5 // pred_region
        %s234 = ssub.s32 %s18, 1
        %s235 = sand.u32 %s31, 1
        %s236 = scalar_lea.sflag [#allocation4], %s235
        %s237 = sand.u32 %s31, 1
        %s238 = smul.addr %s237, 32
        %s239 = scalar_lea.vmem [#allocation3], %s238
        // Predicated region
        $region45: #{tpu_custom_call.1} parent=43 // pred_check
          %p240 = pneg %p44
        $region46: #{tpu_custom_call.1} parent=43 // pred_check_branch
          %242 = sbr.rel (%p240) target = $region48
        $region47: #{tpu_custom_call.1} parent=43 // pred_region
          %243 = dma.done %s236, 512
        $region48: #{tpu_custom_call.1} parent=43 // pred_fallthru
          _
        %s244 = sand.u32 %s31, 1
        %s245 = scalar_lea.sflag [#allocation4], %s244
        %s246 = sand.u32 %s31, 1
        %s247 = smul.addr %s246, 32
        %s248 = scalar_lea.vmem [#allocation3], %s247
        %p249 = pneg %p44
        %p250 = pneg %p41
        %p251 = pneg %p65
        %p252 = pneg %p62
        %p253 = pneg %p86
        %p254 = pneg %p83
        %p255 = pneg %p107
        %p256 = pneg %p104
        %p257 = pneg %p128
        %p258 = pneg %p125
        %p259 = pneg %p149
        %p260 = pneg %p146
        %p261 = pneg %p175
        %p262 = pneg %p172
        %s263 = sand.u32 %s162, 1
        %s264 = scalar_lea.sflag [#allocation5], %s263
        %s265 = sand.u32 %s162, 1
        %s266 = smul.addr %s265, 56
        %s267 = scalar_lea.vmem [#allocation6], %s266
        %v268 = vld [vmem:[%s239] sm:$0xff]
        %v269 = vld [vmem:[%s239 + $0x8] sm:$0xff]
        %v270 = vld [vmem:[%s239 + $0x10] sm:$0xff]
        %v271 = vld [vmem:[%s239 + $0x18] sm:$0xf]
        %v275 = vcombine.high %v268, %v268
        %v276 = vcombine.high %v269, %v269
        %v277 = vcombine.high %v270, %v270
        %281 = vst [vmem:[#allocation2] sm:$0xf] %v268
        %282 = vst [vmem:[#allocation2 + $0x8] sm:$0xf] %v275
        %283 = vst [vmem:[#allocation2 + $0x10] sm:$0xf] %v269
        %284 = vst [vmem:[#allocation2 + $0x18] sm:$0xf] %v276
        %285 = vst [vmem:[#allocation2 + $0x20] sm:$0xf] %v270
        %286 = vst [vmem:[#allocation2 + $0x28] sm:$0xf] %v277
        %vm287 = vcmask 257024
        %288 = vst.msk [vmem:[#allocation2 + $0x30] sm:$0xf] %vm287, %v271
        %v289 = vld [vmem:[%s239] sm:$0xff]
        %v290 = vld [vmem:[%s239 + $0x8] sm:$0xff]
        %v291 = vld [vmem:[%s239 + $0x10] sm:$0xff]
        %v292 = vld [vmem:[%s239 + $0x18] sm:$0xf]
        %v297 = vcombine.low %v289, %v289
        %v298 = vcombine.low %v290, %v290
        %v299 = vcombine.low %v291, %v291
        %v300 = vcombine.low %v292, %v292
        %301 = vrot.lane.b32.xlu0 %v297, 127
        %v302 = vpop.permute.xlu0 %301
        %303 = vrot.lane.b32.xlu0 %v289, 127
        %v304 = vpop.permute.xlu0 %303
        %305 = vrot.lane.b32.xlu0 %v298, 127
        %v306 = vpop.permute.xlu0 %305
        %307 = vrot.lane.b32.xlu0 %v290, 127
        %v308 = vpop.permute.xlu0 %307
        %309 = vrot.lane.b32.xlu0 %v299, 127
        %v310 = vpop.permute.xlu0 %309
        %311 = vrot.lane.b32.xlu0 %v291, 127
        %v312 = vpop.permute.xlu0 %311
        %313 = vrot.lane.b32.xlu0 %v300, 127
        %v314 = vpop.permute.xlu0 %313
        %vm315 = vcmask 1039360
        %v316 = vsel %vm315, %v302, %v304
        %v317 = vsel %vm315, %v304, %v306
        %v318 = vsel %vm315, %v306, %v308
        %v319 = vsel %vm315, %v308, %v310
        %v320 = vsel %vm315, %v310, %v312
        %v321 = vsel %vm315, %v312, %v314
        %329 = vst [vmem:[#allocation2] sm:$0xf0] %v316
        %330 = vst [vmem:[#allocation2 + $0x8] sm:$0xf0] %v317
        %331 = vst [vmem:[#allocation2 + $0x10] sm:$0xf0] %v318
        %332 = vst [vmem:[#allocation2 + $0x18] sm:$0xf0] %v319
        %333 = vst [vmem:[#allocation2 + $0x20] sm:$0xf0] %v320
        %334 = vst [vmem:[#allocation2 + $0x28] sm:$0xf0] %v321
        %vm335 = vcmask 261124
        %336 = vst.msk [vmem:[#allocation2 + $0x30] sm:$0xf0] %vm335, %v314
        %v337 = vld [vmem:[%s239] sm:$0xff]
        %v338 = vld [vmem:[%s239 + $0x8] sm:$0xff]
        %v339 = vld [vmem:[%s239 + $0x10] sm:$0xff]
        %v340 = vld [vmem:[%s239 + $0x18] sm:$0xf]
        %v345 = vcombine.high %v337, %v337
        %v346 = vcombine.high %v338, %v338
        %v347 = vcombine.high %v339, %v339
        %348 = vrot.lane.b32.xlu0 %v337, 126
        %v349 = vpop.permute.xlu0 %348
        %350 = vrot.lane.b32.xlu0 %v345, 126
        %v351 = vpop.permute.xlu0 %350
        %352 = vrot.lane.b32.xlu0 %v338, 126
        %v353 = vpop.permute.xlu0 %352
        %354 = vrot.lane.b32.xlu0 %v346, 126
        %v355 = vpop.permute.xlu0 %354
        %356 = vrot.lane.b32.xlu0 %v339, 126
        %v357 = vpop.permute.xlu0 %356
        %358 = vrot.lane.b32.xlu0 %v347, 126
        %v359 = vpop.permute.xlu0 %358
        %360 = vrot.lane.b32.xlu0 %v340, 126
        %v361 = vpop.permute.xlu0 %360
        %vm362 = vcmask 1031168
        %v363 = vsel %vm362, %v349, %v351
        %v364 = vsel %vm362, %v351, %v353
        %v365 = vsel %vm362, %v353, %v355
        %v366 = vsel %vm362, %v355, %v357
        %v367 = vsel %vm362, %v357, %v359
        %v368 = vsel %vm362, %v359, %v361
        %376 = vst [vmem:[#allocation2 + $0x38] sm:$0xf] %v363
        %377 = vst [vmem:[#allocation2 + $0x40] sm:$0xf] %v364
        %378 = vst [vmem:[#allocation2 + $0x48] sm:$0xf] %v365
        %379 = vst [vmem:[#allocation2 + $0x50] sm:$0xf] %v366
        %380 = vst [vmem:[#allocation2 + $0x58] sm:$0xf] %v367
        %381 = vst [vmem:[#allocation2 + $0x60] sm:$0xf] %v368
        %382 = vst.msk [vmem:[#allocation2 + $0x68] sm:$0xf] %vm287, %v361
        %v383 = vld [vmem:[%s239] sm:$0xff]
        %v384 = vld [vmem:[%s239 + $0x8] sm:$0xff]
        %v385 = vld [vmem:[%s239 + $0x10] sm:$0xff]
        %v386 = vld [vmem:[%s239 + $0x18] sm:$0xf]
        %v391 = vcombine.low %v383, %v383
        %v392 = vcombine.low %v384, %v384
        %v393 = vcombine.low %v385, %v385
        %v394 = vcombine.low %v386, %v386
        %395 = vrot.lane.b32.xlu0 %v391, 118
        %v396 = vpop.permute.xlu0 %395
        %397 = vrot.lane.b32.xlu0 %v383, 118
        %v398 = vpop.permute.xlu0 %397
        %399 = vrot.lane.b32.xlu0 %v392, 118
        %v400 = vpop.permute.xlu0 %399
        %401 = vrot.lane.b32.xlu0 %v384, 118
        %v402 = vpop.permute.xlu0 %401
        %403 = vrot.lane.b32.xlu0 %v393, 118
        %v404 = vpop.permute.xlu0 %403
        %405 = vrot.lane.b32.xlu0 %v385, 118
        %v406 = vpop.permute.xlu0 %405
        %407 = vrot.lane.b32.xlu0 %v394, 118
        %v408 = vpop.permute.xlu0 %407
        %vm409 = vcmask 965632
        %v410 = vsel %vm409, %v396, %v398
        %v411 = vsel %vm409, %v398, %v400
        %v412 = vsel %vm409, %v400, %v402
        %v413 = vsel %vm409, %v402, %v404
        %v414 = vsel %vm409, %v404, %v406
        %v415 = vsel %vm409, %v406, %v408
        %423 = vst [vmem:[#allocation2 + $0x38] sm:$0xf0] %v410
        %424 = vst [vmem:[#allocation2 + $0x40] sm:$0xf0] %v411
        %425 = vst [vmem:[#allocation2 + $0x48] sm:$0xf0] %v412
        %426 = vst [vmem:[#allocation2 + $0x50] sm:$0xf0] %v413
        %427 = vst [vmem:[#allocation2 + $0x58] sm:$0xf0] %v414
        %428 = vst [vmem:[#allocation2 + $0x60] sm:$0xf0] %v415
        %429 = vst.msk [vmem:[#allocation2 + $0x68] sm:$0xf0] %vm335, %v408
        %v430 = vld [vmem:[%s239] sm:$0xff]
        %v431 = vld [vmem:[%s239 + $0x8] sm:$0xff]
        %v432 = vld [vmem:[%s239 + $0x10] sm:$0xff]
        %v433 = vld [vmem:[%s239 + $0x18] sm:$0xf]
        %v438 = vcombine.high %v430, %v430
        %v439 = vcombine.high %v431, %v431
        %v440 = vcombine.high %v432, %v432
        %441 = vrot.lane.b32.xlu0 %v430, 117
        %v442 = vpop.permute.xlu0 %441
        %443 = vrot.lane.b32.xlu0 %v438, 117
        %v444 = vpop.permute.xlu0 %443
        %445 = vrot.lane.b32.xlu0 %v431, 117
        %v446 = vpop.permute.xlu0 %445
        %447 = vrot.lane.b32.xlu0 %v439, 117
        %v448 = vpop.permute.xlu0 %447
        %449 = vrot.lane.b32.xlu0 %v432, 117
        %v450 = vpop.permute.xlu0 %449
        %451 = vrot.lane.b32.xlu0 %v440, 117
        %v452 = vpop.permute.xlu0 %451
        %453 = vrot.lane.b32.xlu0 %v433, 117
        %v454 = vpop.permute.xlu0 %453
        %vm455 = vcmask 957440
        %v456 = vsel %vm455, %v442, %v444
        %v457 = vsel %vm455, %v444, %v446
        %v458 = vsel %vm455, %v446, %v448
        %v459 = vsel %vm455, %v448, %v450
        %v460 = vsel %vm455, %v450, %v452
        %v461 = vsel %vm455, %v452, %v454
        %469 = vst [vmem:[#allocation2 + $0x70] sm:$0xf] %v456
        %470 = vst [vmem:[#allocation2 + $0x78] sm:$0xf] %v457
        %471 = vst [vmem:[#allocation2 + $0x80] sm:$0xf] %v458
        %472 = vst [vmem:[#allocation2 + $0x88] sm:$0xf] %v459
        %473 = vst [vmem:[#allocation2 + $0x90] sm:$0xf] %v460
        %474 = vst [vmem:[#allocation2 + $0x98] sm:$0xf] %v461
        %475 = vst.msk [vmem:[#allocation2 + $0xa0] sm:$0xf] %vm287, %v454
        %v476 = vld [vmem:[%s239] sm:$0xff]
        %v477 = vld [vmem:[%s239 + $0x8] sm:$0xff]
        %v478 = vld [vmem:[%s239 + $0x10] sm:$0xff]
        %v479 = vld [vmem:[%s239 + $0x18] sm:$0xf]
        %v484 = vcombine.low %v476, %v476
        %v485 = vcombine.low %v477, %v477
        %v486 = vcombine.low %v478, %v478
        %v487 = vcombine.low %v479, %v479
        %488 = vrot.lane.b32.xlu0 %v484, 116
        %v489 = vpop.permute.xlu0 %488
        %490 = vrot.lane.b32.xlu0 %v476, 116
        %v491 = vpop.permute.xlu0 %490
        %492 = vrot.lane.b32.xlu0 %v485, 116
        %v493 = vpop.permute.xlu0 %492
        %494 = vrot.lane.b32.xlu0 %v477, 116
        %v495 = vpop.permute.xlu0 %494
        %496 = vrot.lane.b32.xlu0 %v486, 116
        %v497 = vpop.permute.xlu0 %496
        %498 = vrot.lane.b32.xlu0 %v478, 116
        %v499 = vpop.permute.xlu0 %498
        %500 = vrot.lane.b32.xlu0 %v487, 116
        %v501 = vpop.permute.xlu0 %500
        %vm502 = vcmask 949248
        %v503 = vsel %vm502, %v489, %v491
        %v504 = vsel %vm502, %v491, %v493
        %v505 = vsel %vm502, %v493, %v495
        %v506 = vsel %vm502, %v495, %v497
        %v507 = vsel %vm502, %v497, %v499
        %v508 = vsel %vm502, %v499, %v501
        %516 = vst [vmem:[#allocation2 + $0x70] sm:$0xf0] %v503
        %517 = vst [vmem:[#allocation2 + $0x78] sm:$0xf0] %v504
        %518 = vst [vmem:[#allocation2 + $0x80] sm:$0xf0] %v505
        %519 = vst [vmem:[#allocation2 + $0x88] sm:$0xf0] %v506
        %520 = vst [vmem:[#allocation2 + $0x90] sm:$0xf0] %v507
        %521 = vst [vmem:[#allocation2 + $0x98] sm:$0xf0] %v508
        %522 = vst.msk [vmem:[#allocation2 + $0xa0] sm:$0xf0] %vm335, %v501
        %v523 = vld [vmem:[%s239] sm:$0xff]
        %v524 = vld [vmem:[%s239 + $0x8] sm:$0xff]
        %v525 = vld [vmem:[%s239 + $0x10] sm:$0xff]
        %v526 = vld [vmem:[%s239 + $0x18] sm:$0xf]
        %v531 = vcombine.high %v523, %v523
        %v532 = vcombine.high %v524, %v524
        %v533 = vcombine.high %v525, %v525
        %534 = vrot.lane.b32.xlu0 %v523, 108
        %v535 = vpop.permute.xlu0 %534
        %536 = vrot.lane.b32.xlu0 %v531, 108
        %v537 = vpop.permute.xlu0 %536
        %538 = vrot.lane.b32.xlu0 %v524, 108
        %v539 = vpop.permute.xlu0 %538
        %540 = vrot.lane.b32.xlu0 %v532, 108
        %v541 = vpop.permute.xlu0 %540
        %542 = vrot.lane.b32.xlu0 %v525, 108
        %v543 = vpop.permute.xlu0 %542
        %544 = vrot.lane.b32.xlu0 %v533, 108
        %v545 = vpop.permute.xlu0 %544
        %546 = vrot.lane.b32.xlu0 %v526, 108
        %v547 = vpop.permute.xlu0 %546
        %vm548 = vcmask 883712
        %v549 = vsel %vm548, %v535, %v537
        %v550 = vsel %vm548, %v537, %v539
        %v551 = vsel %vm548, %v539, %v541
        %v552 = vsel %vm548, %v541, %v543
        %v553 = vsel %vm548, %v543, %v545
        %v554 = vsel %vm548, %v545, %v547
        %562 = vst [vmem:[#allocation2 + $0xa8] sm:$0xf] %v549
        %563 = vst [vmem:[#allocation2 + $0xb0] sm:$0xf] %v550
        %564 = vst [vmem:[#allocation2 + $0xb8] sm:$0xf] %v551
        %565 = vst [vmem:[#allocation2 + $0xc0] sm:$0xf] %v552
        %566 = vst [vmem:[#allocation2 + $0xc8] sm:$0xf] %v553
        %567 = vst [vmem:[#allocation2 + $0xd0] sm:$0xf] %v554
        %568 = vst.msk [vmem:[#allocation2 + $0xd8] sm:$0xf] %vm287, %v547
        %v569 = vld [vmem:[%s239] sm:$0xff]
        %v570 = vld [vmem:[%s239 + $0x8] sm:$0xff]
        %v571 = vld [vmem:[%s239 + $0x10] sm:$0xff]
        %v572 = vld [vmem:[%s239 + $0x18] sm:$0xf]
        %v577 = vcombine.low %v569, %v569
        %v578 = vcombine.low %v570, %v570
        %v579 = vcombine.low %v571, %v571
        %v580 = vcombine.low %v572, %v572
        %581 = vrot.lane.b32.xlu0 %v577, 107
        %v582 = vpop.permute.xlu0 %581
        %583 = vrot.lane.b32.xlu0 %v569, 107
        %v584 = vpop.permute.xlu0 %583
        %585 = vrot.lane.b32.xlu0 %v578, 107
        %v586 = vpop.permute.xlu0 %585
        %587 = vrot.lane.b32.xlu0 %v570, 107
        %v588 = vpop.permute.xlu0 %587
        %589 = vrot.lane.b32.xlu0 %v579, 107
        %v590 = vpop.permute.xlu0 %589
        %591 = vrot.lane.b32.xlu0 %v571, 107
        %v592 = vpop.permute.xlu0 %591
        %593 = vrot.lane.b32.xlu0 %v580, 107
        %v594 = vpop.permute.xlu0 %593
        %vm595 = vcmask 875520
        %v596 = vsel %vm595, %v582, %v584
        %v597 = vsel %vm595, %v584, %v586
        %v598 = vsel %vm595, %v586, %v588
        %v599 = vsel %vm595, %v588, %v590
        %v600 = vsel %vm595, %v590, %v592
        %v601 = vsel %vm595, %v592, %v594
        %609 = vst [vmem:[#allocation2 + $0xa8] sm:$0xf0] %v596
        %610 = vst [vmem:[#allocation2 + $0xb0] sm:$0xf0] %v597
        %611 = vst [vmem:[#allocation2 + $0xb8] sm:$0xf0] %v598
        %612 = vst [vmem:[#allocation2 + $0xc0] sm:$0xf0] %v599
        %613 = vst [vmem:[#allocation2 + $0xc8] sm:$0xf0] %v600
        %614 = vst [vmem:[#allocation2 + $0xd0] sm:$0xf0] %v601
        %615 = vst.msk [vmem:[#allocation2 + $0xd8] sm:$0xf0] %vm335, %v594
        %v616 = vld [vmem:[%s239] sm:$0xff]
        %v617 = vld [vmem:[%s239 + $0x8] sm:$0xff]
        %v618 = vld [vmem:[%s239 + $0x10] sm:$0xff]
        %v619 = vld [vmem:[%s239 + $0x18] sm:$0xf]
        %v624 = vcombine.high %v616, %v616
        %v625 = vcombine.high %v617, %v617
        %v626 = vcombine.high %v618, %v618
        %627 = vrot.lane.b32.xlu0 %v616, 106
        %v628 = vpop.permute.xlu0 %627
        %629 = vrot.lane.b32.xlu0 %v624, 106
        %v630 = vpop.permute.xlu0 %629
        %631 = vrot.lane.b32.xlu0 %v617, 106
        %v632 = vpop.permute.xlu0 %631
        %633 = vrot.lane.b32.xlu0 %v625, 106
        %v634 = vpop.permute.xlu0 %633
        %635 = vrot.lane.b32.xlu0 %v618, 106
        %v636 = vpop.permute.xlu0 %635
        %637 = vrot.lane.b32.xlu0 %v626, 106
        %v638 = vpop.permute.xlu0 %637
        %639 = vrot.lane.b32.xlu0 %v619, 106
        %v640 = vpop.permute.xlu0 %639
        %vm641 = vcmask 867328
        %v642 = vsel %vm641, %v628, %v630
        %v643 = vsel %vm641, %v630, %v632
        %v644 = vsel %vm641, %v632, %v634
        %v645 = vsel %vm641, %v634, %v636
        %v646 = vsel %vm641, %v636, %v638
        %v647 = vsel %vm641, %v638, %v640
        %655 = vst [vmem:[#allocation2 + $0xe0] sm:$0xf] %v642
        %656 = vst [vmem:[#allocation2 + $0xe8] sm:$0xf] %v643
        %657 = vst [vmem:[#allocation2 + $0xf0] sm:$0xf] %v644
        %658 = vst [vmem:[#allocation2 + $0xf8] sm:$0xf] %v645
        %659 = vst [vmem:[#allocation2 + $0x100] sm:$0xf] %v646
        %660 = vst [vmem:[#allocation2 + $0x108] sm:$0xf] %v647
        %661 = vst.msk [vmem:[#allocation2 + $0x110] sm:$0xf] %vm287, %v640
        %v662 = vld [vmem:[%s239] sm:$0xff]
        %v663 = vld [vmem:[%s239 + $0x8] sm:$0xff]
        %v664 = vld [vmem:[%s239 + $0x10] sm:$0xff]
        %v665 = vld [vmem:[%s239 + $0x18] sm:$0xff]
        %v670 = vcombine.low %v662, %v662
        %v671 = vcombine.low %v663, %v663
        %v672 = vcombine.low %v664, %v664
        %v673 = vcombine.low %v665, %v665
        %674 = vrot.lane.b32.xlu0 %v670, 28
        %v675 = vpop.permute.xlu0 %674
        %676 = vrot.lane.b32.xlu0 %v662, 28
        %v677 = vpop.permute.xlu0 %676
        %678 = vrot.lane.b32.xlu0 %v671, 28
        %v679 = vpop.permute.xlu0 %678
        %680 = vrot.lane.b32.xlu0 %v663, 28
        %v681 = vpop.permute.xlu0 %680
        %682 = vrot.lane.b32.xlu0 %v672, 28
        %v683 = vpop.permute.xlu0 %682
        %684 = vrot.lane.b32.xlu0 %v664, 28
        %v685 = vpop.permute.xlu0 %684
        %686 = vrot.lane.b32.xlu0 %v673, 28
        %v687 = vpop.permute.xlu0 %686
        %688 = vrot.lane.b32.xlu0 %v665, 28
        %v689 = vpop.permute.xlu0 %688
        %vm690 = vcmask 228352
        %v691 = vsel %vm690, %v675, %v677
        %v692 = vsel %vm690, %v677, %v679
        %v693 = vsel %vm690, %v679, %v681
        %v694 = vsel %vm690, %v681, %v683
        %v695 = vsel %vm690, %v683, %v685
        %v696 = vsel %vm690, %v685, %v687
        %v697 = vsel %vm690, %v687, %v689
        %705 = vst [vmem:[#allocation2 + $0xe0] sm:$0xf0] %v691
        %706 = vst [vmem:[#allocation2 + $0xe8] sm:$0xf0] %v692
        %707 = vst [vmem:[#allocation2 + $0xf0] sm:$0xf0] %v693
        %708 = vst [vmem:[#allocation2 + $0xf8] sm:$0xf0] %v694
        %709 = vst [vmem:[#allocation2 + $0x100] sm:$0xf0] %v695
        %710 = vst [vmem:[#allocation2 + $0x108] sm:$0xf0] %v696
        %711 = vst.msk [vmem:[#allocation2 + $0x110] sm:$0xf0] %vm335, %v697
        %v712 = vld [vmem:[%s239] sm:$0xff]
        %v713 = vld [vmem:[%s239 + $0x8] sm:$0xff]
        %v714 = vld [vmem:[%s239 + $0x10] sm:$0xff]
        %v715 = vld [vmem:[%s239 + $0x18] sm:$0xff]
        %v720 = vcombine.high %v712, %v712
        %v721 = vcombine.high %v713, %v713
        %v722 = vcombine.high %v714, %v714
        %v723 = vcombine.high %v715, %v715
        %724 = vrot.lane.b32.xlu0 %v712, 27
        %v725 = vpop.permute.xlu0 %724
        %726 = vrot.lane.b32.xlu0 %v720, 27
        %v727 = vpop.permute.xlu0 %726
        %728 = vrot.lane.b32.xlu0 %v713, 27
        %v729 = vpop.permute.xlu0 %728
        %730 = vrot.lane.b32.xlu0 %v721, 27
        %v731 = vpop.permute.xlu0 %730
        %732 = vrot.lane.b32.xlu0 %v714, 27
        %v733 = vpop.permute.xlu0 %732
        %734 = vrot.lane.b32.xlu0 %v722, 27
        %v735 = vpop.permute.xlu0 %734
        %736 = vrot.lane.b32.xlu0 %v715, 27
        %v737 = vpop.permute.xlu0 %736
        %738 = vrot.lane.b32.xlu0 %v723, 27
        %v739 = vpop.permute.xlu0 %738
        %vm740 = vcmask 220160
        %v741 = vsel %vm740, %v725, %v727
        %v742 = vsel %vm740, %v727, %v729
        %v743 = vsel %vm740, %v729, %v731
        %v744 = vsel %vm740, %v731, %v733
        %v745 = vsel %vm740, %v733, %v735
        %v746 = vsel %vm740, %v735, %v737
        %v747 = vsel %vm740, %v737, %v739
        %755 = vst [vmem:[#allocation2 + $0x118] sm:$0xf] %v741
        %756 = vst [vmem:[#allocation2 + $0x120] sm:$0xf] %v742
        %757 = vst [vmem:[#allocation2 + $0x128] sm:$0xf] %v743
        %758 = vst [vmem:[#allocation2 + $0x130] sm:$0xf] %v744
        %759 = vst [vmem:[#allocation2 + $0x138] sm:$0xf] %v745
        %760 = vst [vmem:[#allocation2 + $0x140] sm:$0xf] %v746
        %761 = vst.msk [vmem:[#allocation2 + $0x148] sm:$0xf] %vm287, %v747
        %v762 = vld [vmem:[%s239] sm:$0xff]
        %v763 = vld [vmem:[%s239 + $0x8] sm:$0xff]
        %v764 = vld [vmem:[%s239 + $0x10] sm:$0xff]
        %v765 = vld [vmem:[%s239 + $0x18] sm:$0xff]
        %v770 = vcombine.low %v762, %v762
        %v771 = vcombine.low %v763, %v763
        %v772 = vcombine.low %v764, %v764
        %v773 = vcombine.low %v765, %v765
        %774 = vrot.lane.b32.xlu0 %v770, 26
        %v775 = vpop.permute.xlu0 %774
        %776 = vrot.lane.b32.xlu0 %v762, 26
        %v777 = vpop.permute.xlu0 %776
        %778 = vrot.lane.b32.xlu0 %v771, 26
        %v779 = vpop.permute.xlu0 %778
        %780 = vrot.lane.b32.xlu0 %v763, 26
        %v781 = vpop.permute.xlu0 %780
        %782 = vrot.lane.b32.xlu0 %v772, 26
        %v783 = vpop.permute.xlu0 %782
        %784 = vrot.lane.b32.xlu0 %v764, 26
        %v785 = vpop.permute.xlu0 %784
        %786 = vrot.lane.b32.xlu0 %v773, 26
        %v787 = vpop.permute.xlu0 %786
        %788 = vrot.lane.b32.xlu0 %v765, 26
        %v789 = vpop.permute.xlu0 %788
        %vm790 = vcmask 211968
        %v791 = vsel %vm790, %v775, %v777
        %v792 = vsel %vm790, %v777, %v779
        %v793 = vsel %vm790, %v779, %v781
        %v794 = vsel %vm790, %v781, %v783
        %v795 = vsel %vm790, %v783, %v785
        %v796 = vsel %vm790, %v785, %v787
        %v797 = vsel %vm790, %v787, %v789
        %805 = vst [vmem:[#allocation2 + $0x118] sm:$0xf0] %v791
        %806 = vst [vmem:[#allocation2 + $0x120] sm:$0xf0] %v792
        %807 = vst [vmem:[#allocation2 + $0x128] sm:$0xf0] %v793
        %808 = vst [vmem:[#allocation2 + $0x130] sm:$0xf0] %v794
        %809 = vst [vmem:[#allocation2 + $0x138] sm:$0xf0] %v795
        %810 = vst [vmem:[#allocation2 + $0x140] sm:$0xf0] %v796
        %811 = vst.msk [vmem:[#allocation2 + $0x148] sm:$0xf0] %vm335, %v797
        %v812 = vld [vmem:[%s239] sm:$0xff]
        %v813 = vld [vmem:[%s239 + $0x8] sm:$0xff]
        %v814 = vld [vmem:[%s239 + $0x10] sm:$0xff]
        %v815 = vld [vmem:[%s239 + $0x18] sm:$0xff]
        %v820 = vcombine.high %v812, %v812
        %v821 = vcombine.high %v813, %v813
        %v822 = vcombine.high %v814, %v814
        %v823 = vcombine.high %v815, %v815
        %824 = vrot.lane.b32.xlu0 %v812, 18
        %v825 = vpop.permute.xlu0 %824
        %826 = vrot.lane.b32.xlu0 %v820, 18
        %v827 = vpop.permute.xlu0 %826
        %828 = vrot.lane.b32.xlu0 %v813, 18
        %v829 = vpop.permute.xlu0 %828
        %830 = vrot.lane.b32.xlu0 %v821, 18
        %v831 = vpop.permute.xlu0 %830
        %832 = vrot.lane.b32.xlu0 %v814, 18
        %v833 = vpop.permute.xlu0 %832
        %834 = vrot.lane.b32.xlu0 %v822, 18
        %v835 = vpop.permute.xlu0 %834
        %836 = vrot.lane.b32.xlu0 %v815, 18
        %v837 = vpop.permute.xlu0 %836
        %838 = vrot.lane.b32.xlu0 %v823, 18
        %v839 = vpop.permute.xlu0 %838
        %vm840 = vcmask 146432
        %v841 = vsel %vm840, %v825, %v827
        %v842 = vsel %vm840, %v827, %v829
        %v843 = vsel %vm840, %v829, %v831
        %v844 = vsel %vm840, %v831, %v833
        %v845 = vsel %vm840, %v833, %v835
        %v846 = vsel %vm840, %v835, %v837
        %v847 = vsel %vm840, %v837, %v839
        %855 = vst [vmem:[#allocation2 + $0x150] sm:$0xf] %v841
        %856 = vst [vmem:[#allocation2 + $0x158] sm:$0xf] %v842
        %857 = vst [vmem:[#allocation2 + $0x160] sm:$0xf] %v843
        %858 = vst [vmem:[#allocation2 + $0x168] sm:$0xf] %v844
        %859 = vst [vmem:[#allocation2 + $0x170] sm:$0xf] %v845
        %860 = vst [vmem:[#allocation2 + $0x178] sm:$0xf] %v846
        %861 = vst.msk [vmem:[#allocation2 + $0x180] sm:$0xf] %vm287, %v847
        %v862 = vld [vmem:[%s239] sm:$0xff]
        %v863 = vld [vmem:[%s239 + $0x8] sm:$0xff]
        %v864 = vld [vmem:[%s239 + $0x10] sm:$0xff]
        %v865 = vld [vmem:[%s239 + $0x18] sm:$0xff]
        %v870 = vcombine.low %v862, %v862
        %v871 = vcombine.low %v863, %v863
        %v872 = vcombine.low %v864, %v864
        %v873 = vcombine.low %v865, %v865
        %874 = vrot.lane.b32.xlu0 %v870, 17
        %v875 = vpop.permute.xlu0 %874
        %876 = vrot.lane.b32.xlu0 %v862, 17
        %v877 = vpop.permute.xlu0 %876
        %878 = vrot.lane.b32.xlu0 %v871, 17
        %v879 = vpop.permute.xlu0 %878
        %880 = vrot.lane.b32.xlu0 %v863, 17
        %v881 = vpop.permute.xlu0 %880
        %882 = vrot.lane.b32.xlu0 %v872, 17
        %v883 = vpop.permute.xlu0 %882
        %884 = vrot.lane.b32.xlu0 %v864, 17
        %v885 = vpop.permute.xlu0 %884
        %886 = vrot.lane.b32.xlu0 %v873, 17
        %v887 = vpop.permute.xlu0 %886
        %888 = vrot.lane.b32.xlu0 %v865, 17
        %v889 = vpop.permute.xlu0 %888
        %vm890 = vcmask 138240
        %v891 = vsel %vm890, %v875, %v877
        %v892 = vsel %vm890, %v877, %v879
        %v893 = vsel %vm890, %v879, %v881
        %v894 = vsel %vm890, %v881, %v883
        %v895 = vsel %vm890, %v883, %v885
        %v896 = vsel %vm890, %v885, %v887
        %v897 = vsel %vm890, %v887, %v889
        %905 = vst [vmem:[#allocation2 + $0x150] sm:$0xf0] %v891
        %906 = vst [vmem:[#allocation2 + $0x158] sm:$0xf0] %v892
        %907 = vst [vmem:[#allocation2 + $0x160] sm:$0xf0] %v893
        %908 = vst [vmem:[#allocation2 + $0x168] sm:$0xf0] %v894
        %909 = vst [vmem:[#allocation2 + $0x170] sm:$0xf0] %v895
        %910 = vst [vmem:[#allocation2 + $0x178] sm:$0xf0] %v896
        %911 = vst.msk [vmem:[#allocation2 + $0x180] sm:$0xf0] %vm335, %v897
        %v912 = vld [vmem:[%s239] sm:$0xff]
        %v913 = vld [vmem:[%s239 + $0x8] sm:$0xff]
        %v914 = vld [vmem:[%s239 + $0x10] sm:$0xff]
        %v915 = vld [vmem:[%s239 + $0x18] sm:$0xff]
        %v920 = vcombine.high %v912, %v912
        %v921 = vcombine.high %v913, %v913
        %v922 = vcombine.high %v914, %v914
        %v923 = vcombine.high %v915, %v915
        %924 = vrot.lane.b32.xlu0 %v912, 16
        %v925 = vpop.permute.xlu0 %924
        %926 = vrot.lane.b32.xlu0 %v920, 16
        %v927 = vpop.permute.xlu0 %926
        %928 = vrot.lane.b32.xlu0 %v913, 16
        %v929 = vpop.permute.xlu0 %928
        %930 = vrot.lane.b32.xlu0 %v921, 16
        %v931 = vpop.permute.xlu0 %930
        %932 = vrot.lane.b32.xlu0 %v914, 16
        %v933 = vpop.permute.xlu0 %932
        %934 = vrot.lane.b32.xlu0 %v922, 16
        %v935 = vpop.permute.xlu0 %934
        %936 = vrot.lane.b32.xlu0 %v915, 16
        %v937 = vpop.permute.xlu0 %936
        %938 = vrot.lane.b32.xlu0 %v923, 16
        %v939 = vpop.permute.xlu0 %938
        %vm940 = vcmask 130048
        %v941 = vsel %vm940, %v925, %v927
        %v942 = vsel %vm940, %v927, %v929
        %v943 = vsel %vm940, %v929, %v931
        %v944 = vsel %vm940, %v931, %v933
        %v945 = vsel %vm940, %v933, %v935
        %v946 = vsel %vm940, %v935, %v937
        %v947 = vsel %vm940, %v937, %v939
        %955 = vst [vmem:[#allocation2 + $0x188] sm:$0xf] %v941
        %956 = vst [vmem:[#allocation2 + $0x190] sm:$0xf] %v942
        %957 = vst [vmem:[#allocation2 + $0x198] sm:$0xf] %v943
        %958 = vst [vmem:[#allocation2 + $0x1a0] sm:$0xf] %v944
        %959 = vst [vmem:[#allocation2 + $0x1a8] sm:$0xf] %v945
        %960 = vst [vmem:[#allocation2 + $0x1b0] sm:$0xf] %v946
        %961 = vst.msk [vmem:[#allocation2 + $0x1b8] sm:$0xf] %vm287, %v947
        %v962 = vld [vmem:[%s239] sm:$0xff]
        %v963 = vld [vmem:[%s239 + $0x8] sm:$0xff]
        %v964 = vld [vmem:[%s239 + $0x10] sm:$0xff]
        %v965 = vld [vmem:[%s239 + $0x18] sm:$0xff]
        %v970 = vcombine.low %v962, %v962
        %v971 = vcombine.low %v963, %v963
        %v972 = vcombine.low %v964, %v964
        %v973 = vcombine.low %v965, %v965
        %974 = vrot.lane.b32.xlu0 %v970, 8
        %v975 = vpop.permute.xlu0 %974
        %976 = vrot.lane.b32.xlu0 %v962, 8
        %v977 = vpop.permute.xlu0 %976
        %978 = vrot.lane.b32.xlu0 %v971, 8
        %v979 = vpop.permute.xlu0 %978
        %980 = vrot.lane.b32.xlu0 %v963, 8
        %v981 = vpop.permute.xlu0 %980
        %982 = vrot.lane.b32.xlu0 %v972, 8
        %v983 = vpop.permute.xlu0 %982
        %984 = vrot.lane.b32.xlu0 %v964, 8
        %v985 = vpop.permute.xlu0 %984
        %986 = vrot.lane.b32.xlu0 %v973, 8
        %v987 = vpop.permute.xlu0 %986
        %988 = vrot.lane.b32.xlu0 %v965, 8
        %v989 = vpop.permute.xlu0 %988
        %vm990 = vcmask 64512
        %v991 = vsel %vm990, %v975, %v977
        %v992 = vsel %vm990, %v977, %v979
        %v993 = vsel %vm990, %v979, %v981
        %v994 = vsel %vm990, %v981, %v983
        %v995 = vsel %vm990, %v983, %v985
        %v996 = vsel %vm990, %v985, %v987
        %v997 = vsel %vm990, %v987, %v989
        %1005 = vst [vmem:[#allocation2 + $0x188] sm:$0xf0] %v991
        %1006 = vst [vmem:[#allocation2 + $0x190] sm:$0xf0] %v992
        %1007 = vst [vmem:[#allocation2 + $0x198] sm:$0xf0] %v993
        %1008 = vst [vmem:[#allocation2 + $0x1a0] sm:$0xf0] %v994
        %1009 = vst [vmem:[#allocation2 + $0x1a8] sm:$0xf0] %v995
        %1010 = vst [vmem:[#allocation2 + $0x1b0] sm:$0xf0] %v996
        %1011 = vst.msk [vmem:[#allocation2 + $0x1b8] sm:$0xf0] %vm335, %v997
        %v1012 = vld [vmem:[%s239] sm:$0xff]
        %v1013 = vld [vmem:[%s239 + $0x8] sm:$0xff]
        %v1014 = vld [vmem:[%s239 + $0x10] sm:$0xff]
        %v1015 = vld [vmem:[%s239 + $0x18] sm:$0xff]
        %v1020 = vcombine.high %v1012, %v1012
        %v1021 = vcombine.high %v1013, %v1013
        %v1022 = vcombine.high %v1014, %v1014
        %v1023 = vcombine.high %v1015, %v1015
        %1024 = vrot.lane.b32.xlu0 %v1012, 7
        %v1025 = vpop.permute.xlu0 %1024
        %1026 = vrot.lane.b32.xlu0 %v1020, 7
        %v1027 = vpop.permute.xlu0 %1026
        %1028 = vrot.lane.b32.xlu0 %v1013, 7
        %v1029 = vpop.permute.xlu0 %1028
        %1030 = vrot.lane.b32.xlu0 %v1021, 7
        %v1031 = vpop.permute.xlu0 %1030
        %1032 = vrot.lane.b32.xlu0 %v1014, 7
        %v1033 = vpop.permute.xlu0 %1032
        %1034 = vrot.lane.b32.xlu0 %v1022, 7
        %v1035 = vpop.permute.xlu0 %1034
        %1036 = vrot.lane.b32.xlu0 %v1015, 7
        %v1037 = vpop.permute.xlu0 %1036
        %1038 = vrot.lane.b32.xlu0 %v1023, 7
        %v1039 = vpop.permute.xlu0 %1038
        %vm1040 = vcmask 56320
        %v1041 = vsel %vm1040, %v1025, %v1027
        %v1042 = vsel %vm1040, %v1027, %v1029
        %v1043 = vsel %vm1040, %v1029, %v1031
        %v1044 = vsel %vm1040, %v1031, %v1033
        %v1045 = vsel %vm1040, %v1033, %v1035
        %v1046 = vsel %vm1040, %v1035, %v1037
        %v1047 = vsel %vm1040, %v1037, %v1039
        %1055 = vst [vmem:[#allocation2 + $0x1c0] sm:$0xf] %v1041
        %1056 = vst [vmem:[#allocation2 + $0x1c8] sm:$0xf] %v1042
        %1057 = vst [vmem:[#allocation2 + $0x1d0] sm:$0xf] %v1043
        %1058 = vst [vmem:[#allocation2 + $0x1d8] sm:$0xf] %v1044
        %1059 = vst [vmem:[#allocation2 + $0x1e0] sm:$0xf] %v1045
        %1060 = vst [vmem:[#allocation2 + $0x1e8] sm:$0xf] %v1046
        %1061 = vst.msk [vmem:[#allocation2 + $0x1f0] sm:$0xf] %vm287, %v1047
        %v1062 = vld [vmem:[%s239] sm:$0xff]
        %v1063 = vld [vmem:[%s239 + $0x8] sm:$0xff]
        %v1064 = vld [vmem:[%s239 + $0x10] sm:$0xff]
        %v1065 = vld [vmem:[%s239 + $0x18] sm:$0xff]
        %v1070 = vcombine.low %v1062, %v1062
        %v1071 = vcombine.low %v1063, %v1063
        %v1072 = vcombine.low %v1064, %v1064
        %v1073 = vcombine.low %v1065, %v1065
        %1074 = vrot.lane.b32.xlu0 %v1070, 6
        %v1075 = vpop.permute.xlu0 %1074
        %1076 = vrot.lane.b32.xlu0 %v1062, 6
        %v1077 = vpop.permute.xlu0 %1076
        %1078 = vrot.lane.b32.xlu0 %v1071, 6
        %v1079 = vpop.permute.xlu0 %1078
        %1080 = vrot.lane.b32.xlu0 %v1063, 6
        %v1081 = vpop.permute.xlu0 %1080
        %1082 = vrot.lane.b32.xlu0 %v1072, 6
        %v1083 = vpop.permute.xlu0 %1082
        %1084 = vrot.lane.b32.xlu0 %v1064, 6
        %v1085 = vpop.permute.xlu0 %1084
        %1086 = vrot.lane.b32.xlu0 %v1073, 6
        %v1087 = vpop.permute.xlu0 %1086
        %1088 = vrot.lane.b32.xlu0 %v1065, 6
        %v1089 = vpop.permute.xlu0 %1088
        %vm1090 = vcmask 48128
        %v1091 = vsel %vm1090, %v1075, %v1077
        %v1092 = vsel %vm1090, %v1077, %v1079
        %v1093 = vsel %vm1090, %v1079, %v1081
        %v1094 = vsel %vm1090, %v1081, %v1083
        %v1095 = vsel %vm1090, %v1083, %v1085
        %v1096 = vsel %vm1090, %v1085, %v1087
        %v1097 = vsel %vm1090, %v1087, %v1089
        %1105 = vst [vmem:[#allocation2 + $0x1c0] sm:$0xf0] %v1091
        %1106 = vst [vmem:[#allocation2 + $0x1c8] sm:$0xf0] %v1092
        %1107 = vst [vmem:[#allocation2 + $0x1d0] sm:$0xf0] %v1093
        %1108 = vst [vmem:[#allocation2 + $0x1d8] sm:$0xf0] %v1094
        %1109 = vst [vmem:[#allocation2 + $0x1e0] sm:$0xf0] %v1095
        %1110 = vst [vmem:[#allocation2 + $0x1e8] sm:$0xf0] %v1096
        %1111 = vst.msk [vmem:[#allocation2 + $0x1f0] sm:$0xf0] %vm335, %v1097
        %v1112 = vld [vmem:[%s239 + $0x4] sm:$0xff]
        %v1113 = vld [vmem:[%s239 + $0xc] sm:$0xff]
        %v1114 = vld [vmem:[%s239 + $0x14] sm:$0xff]
        %v1115 = vld [vmem:[%s239 + $0x1c] sm:$0xf]
        %v1120 = vcombine.high %v1112, %v1112
        %v1121 = vcombine.high %v1113, %v1113
        %v1122 = vcombine.high %v1114, %v1114
        %1123 = vrot.lane.b32.xlu0 %v1112, 56
        %v1124 = vpop.permute.xlu0 %1123
        %1125 = vrot.lane.b32.xlu0 %v1120, 56
        %v1126 = vpop.permute.xlu0 %1125
        %1127 = vrot.lane.b32.xlu0 %v1113, 56
        %v1128 = vpop.permute.xlu0 %1127
        %1129 = vrot.lane.b32.xlu0 %v1121, 56
        %v1130 = vpop.permute.xlu0 %1129
        %1131 = vrot.lane.b32.xlu0 %v1114, 56
        %v1132 = vpop.permute.xlu0 %1131
        %1133 = vrot.lane.b32.xlu0 %v1122, 56
        %v1134 = vpop.permute.xlu0 %1133
        %1135 = vrot.lane.b32.xlu0 %v1115, 56
        %v1136 = vpop.permute.xlu0 %1135
        %vm1137 = vcmask 457728
        %v1138 = vsel %vm1137, %v1124, %v1126
        %v1139 = vsel %vm1137, %v1126, %v1128
        %v1140 = vsel %vm1137, %v1128, %v1130
        %v1141 = vsel %vm1137, %v1130, %v1132
        %v1142 = vsel %vm1137, %v1132, %v1134
        %v1143 = vsel %vm1137, %v1134, %v1136
        %1151 = vst [vmem:[#allocation2 + $0x1f8] sm:$0xf] %v1138
        %1152 = vst [vmem:[#allocation2 + $0x200] sm:$0xf] %v1139
        %1153 = vst [vmem:[#allocation2 + $0x208] sm:$0xf] %v1140
        %1154 = vst [vmem:[#allocation2 + $0x210] sm:$0xf] %v1141
        %1155 = vst [vmem:[#allocation2 + $0x218] sm:$0xf] %v1142
        %1156 = vst [vmem:[#allocation2 + $0x220] sm:$0xf] %v1143
        %1157 = vst.msk [vmem:[#allocation2 + $0x228] sm:$0xf] %vm287, %v1136
        %v1158 = vld [vmem:[%s239 + $0x4] sm:$0xff]
        %v1159 = vld [vmem:[%s239 + $0xc] sm:$0xff]
        %v1160 = vld [vmem:[%s239 + $0x14] sm:$0xff]
        %v1161 = vld [vmem:[%s239 + $0x1c] sm:$0xf]
        %v1166 = vcombine.low %v1158, %v1158
        %v1167 = vcombine.low %v1159, %v1159
        %v1168 = vcombine.low %v1160, %v1160
        %v1169 = vcombine.low %v1161, %v1161
        %1170 = vrot.lane.b32.xlu0 %v1166, 55
        %v1171 = vpop.permute.xlu0 %1170
        %1172 = vrot.lane.b32.xlu0 %v1158, 55
        %v1173 = vpop.permute.xlu0 %1172
        %1174 = vrot.lane.b32.xlu0 %v1167, 55
        %v1175 = vpop.permute.xlu0 %1174
        %1176 = vrot.lane.b32.xlu0 %v1159, 55
        %v1177 = vpop.permute.xlu0 %1176
        %1178 = vrot.lane.b32.xlu0 %v1168, 55
        %v1179 = vpop.permute.xlu0 %1178
        %1180 = vrot.lane.b32.xlu0 %v1160, 55
        %v1181 = vpop.permute.xlu0 %1180
        %1182 = vrot.lane.b32.xlu0 %v1169, 55
        %v1183 = vpop.permute.xlu0 %1182
        %vm1184 = vcmask 449536
        %v1185 = vsel %vm1184, %v1171, %v1173
        %v1186 = vsel %vm1184, %v1173, %v1175
        %v1187 = vsel %vm1184, %v1175, %v1177
        %v1188 = vsel %vm1184, %v1177, %v1179
        %v1189 = vsel %vm1184, %v1179, %v1181
        %v1190 = vsel %vm1184, %v1181, %v1183
        %1198 = vst [vmem:[#allocation2 + $0x1f8] sm:$0xf0] %v1185
        %1199 = vst [vmem:[#allocation2 + $0x200] sm:$0xf0] %v1186
        %1200 = vst [vmem:[#allocation2 + $0x208] sm:$0xf0] %v1187
        %1201 = vst [vmem:[#allocation2 + $0x210] sm:$0xf0] %v1188
        %1202 = vst [vmem:[#allocation2 + $0x218] sm:$0xf0] %v1189
        %1203 = vst [vmem:[#allocation2 + $0x220] sm:$0xf0] %v1190
        %1204 = vst.msk [vmem:[#allocation2 + $0x228] sm:$0xf0] %vm335, %v1183
        %v1205 = vld [vmem:[%s239 + $0x4] sm:$0xff]
        %v1206 = vld [vmem:[%s239 + $0xc] sm:$0xff]
        %v1207 = vld [vmem:[%s239 + $0x14] sm:$0xff]
        %v1208 = vld [vmem:[%s239 + $0x1c] sm:$0xf]
        %v1213 = vcombine.high %v1205, %v1205
        %v1214 = vcombine.high %v1206, %v1206
        %v1215 = vcombine.high %v1207, %v1207
        %1216 = vrot.lane.b32.xlu0 %v1205, 54
        %v1217 = vpop.permute.xlu0 %1216
        %1218 = vrot.lane.b32.xlu0 %v1213, 54
        %v1219 = vpop.permute.xlu0 %1218
        %1220 = vrot.lane.b32.xlu0 %v1206, 54
        %v1221 = vpop.permute.xlu0 %1220
        %1222 = vrot.lane.b32.xlu0 %v1214, 54
        %v1223 = vpop.permute.xlu0 %1222
        %1224 = vrot.lane.b32.xlu0 %v1207, 54
        %v1225 = vpop.permute.xlu0 %1224
        %1226 = vrot.lane.b32.xlu0 %v1215, 54
        %v1227 = vpop.permute.xlu0 %1226
        %1228 = vrot.lane.b32.xlu0 %v1208, 54
        %v1229 = vpop.permute.xlu0 %1228
        %vm1230 = vcmask 441344
        %v1231 = vsel %vm1230, %v1217, %v1219
        %v1232 = vsel %vm1230, %v1219, %v1221
        %v1233 = vsel %vm1230, %v1221, %v1223
        %v1234 = vsel %vm1230, %v1223, %v1225
        %v1235 = vsel %vm1230, %v1225, %v1227
        %v1236 = vsel %vm1230, %v1227, %v1229
        %1244 = vst [vmem:[#allocation2 + $0x230] sm:$0xf] %v1231
        %1245 = vst [vmem:[#allocation2 + $0x238] sm:$0xf] %v1232
        %1246 = vst [vmem:[#allocation2 + $0x240] sm:$0xf] %v1233
        %1247 = vst [vmem:[#allocation2 + $0x248] sm:$0xf] %v1234
        %1248 = vst [vmem:[#allocation2 + $0x250] sm:$0xf] %v1235
        %1249 = vst [vmem:[#allocation2 + $0x258] sm:$0xf] %v1236
        %1250 = vst.msk [vmem:[#allocation2 + $0x260] sm:$0xf] %vm287, %v1229
        %v1251 = vld [vmem:[%s239 + $0x4] sm:$0xff]
        %v1252 = vld [vmem:[%s239 + $0xc] sm:$0xff]
        %v1253 = vld [vmem:[%s239 + $0x14] sm:$0xff]
        %v1254 = vld [vmem:[%s239 + $0x1c] sm:$0xf]
        %v1259 = vcombine.low %v1251, %v1251
        %v1260 = vcombine.low %v1252, %v1252
        %v1261 = vcombine.low %v1253, %v1253
        %v1262 = vcombine.low %v1254, %v1254
        %1263 = vrot.lane.b32.xlu0 %v1259, 46
        %v1264 = vpop.permute.xlu0 %1263
        %1265 = vrot.lane.b32.xlu0 %v1251, 46
        %v1266 = vpop.permute.xlu0 %1265
        %1267 = vrot.lane.b32.xlu0 %v1260, 46
        %v1268 = vpop.permute.xlu0 %1267
        %1269 = vrot.lane.b32.xlu0 %v1252, 46
        %v1270 = vpop.permute.xlu0 %1269
        %1271 = vrot.lane.b32.xlu0 %v1261, 46
        %v1272 = vpop.permute.xlu0 %1271
        %1273 = vrot.lane.b32.xlu0 %v1253, 46
        %v1274 = vpop.permute.xlu0 %1273
        %1275 = vrot.lane.b32.xlu0 %v1262, 46
        %v1276 = vpop.permute.xlu0 %1275
        %vm1277 = vcmask 375808
        %v1278 = vsel %vm1277, %v1264, %v1266
        %v1279 = vsel %vm1277, %v1266, %v1268
        %v1280 = vsel %vm1277, %v1268, %v1270
        %v1281 = vsel %vm1277, %v1270, %v1272
        %v1282 = vsel %vm1277, %v1272, %v1274
        %v1283 = vsel %vm1277, %v1274, %v1276
        %1291 = vst [vmem:[#allocation2 + $0x230] sm:$0xf0] %v1278
        %1292 = vst [vmem:[#allocation2 + $0x238] sm:$0xf0] %v1279
        %1293 = vst [vmem:[#allocation2 + $0x240] sm:$0xf0] %v1280
        %1294 = vst [vmem:[#allocation2 + $0x248] sm:$0xf0] %v1281
        %1295 = vst [vmem:[#allocation2 + $0x250] sm:$0xf0] %v1282
        %1296 = vst [vmem:[#allocation2 + $0x258] sm:$0xf0] %v1283
        %1297 = vst.msk [vmem:[#allocation2 + $0x260] sm:$0xf0] %vm335, %v1276
        %v1298 = vld [vmem:[%s239 + $0x4] sm:$0xff]
        %v1299 = vld [vmem:[%s239 + $0xc] sm:$0xff]
        %v1300 = vld [vmem:[%s239 + $0x14] sm:$0xff]
        %v1301 = vld [vmem:[%s239 + $0x1c] sm:$0xf]
        %v1306 = vcombine.high %v1298, %v1298
        %v1307 = vcombine.high %v1299, %v1299
        %v1308 = vcombine.high %v1300, %v1300
        %1309 = vrot.lane.b32.xlu0 %v1298, 45
        %v1310 = vpop.permute.xlu0 %1309
        %1311 = vrot.lane.b32.xlu0 %v1306, 45
        %v1312 = vpop.permute.xlu0 %1311
        %1313 = vrot.lane.b32.xlu0 %v1299, 45
        %v1314 = vpop.permute.xlu0 %1313
        %1315 = vrot.lane.b32.xlu0 %v1307, 45
        %v1316 = vpop.permute.xlu0 %1315
        %1317 = vrot.lane.b32.xlu0 %v1300, 45
        %v1318 = vpop.permute.xlu0 %1317
        %1319 = vrot.lane.b32.xlu0 %v1308, 45
        %v1320 = vpop.permute.xlu0 %1319
        %1321 = vrot.lane.b32.xlu0 %v1301, 45
        %v1322 = vpop.permute.xlu0 %1321
        %vm1323 = vcmask 367616
        %v1324 = vsel %vm1323, %v1310, %v1312
        %v1325 = vsel %vm1323, %v1312, %v1314
        %v1326 = vsel %vm1323, %v1314, %v1316
        %v1327 = vsel %vm1323, %v1316, %v1318
        %v1328 = vsel %vm1323, %v1318, %v1320
        %v1329 = vsel %vm1323, %v1320, %v1322
        %1337 = vst [vmem:[#allocation2 + $0x268] sm:$0xf] %v1324
        %1338 = vst [vmem:[#allocation2 + $0x270] sm:$0xf] %v1325
        %1339 = vst [vmem:[#allocation2 + $0x278] sm:$0xf] %v1326
        %1340 = vst [vmem:[#allocation2 + $0x280] sm:$0xf] %v1327
        %1341 = vst [vmem:[#allocation2 + $0x288] sm:$0xf] %v1328
        %1342 = vst [vmem:[#allocation2 + $0x290] sm:$0xf] %v1329
        %1343 = vst.msk [vmem:[#allocation2 + $0x298] sm:$0xf] %vm287, %v1322
        %v1344 = vld [vmem:[%s239 + $0x4] sm:$0xff]
        %v1345 = vld [vmem:[%s239 + $0xc] sm:$0xff]
        %v1346 = vld [vmem:[%s239 + $0x14] sm:$0xff]
        %v1347 = vld [vmem:[%s239 + $0x1c] sm:$0xf]
        %v1352 = vcombine.low %v1344, %v1344
        %v1353 = vcombine.low %v1345, %v1345
        %v1354 = vcombine.low %v1346, %v1346
        %v1355 = vcombine.low %v1347, %v1347
        %1356 = vrot.lane.b32.xlu0 %v1352, 44
        %v1357 = vpop.permute.xlu0 %1356
        %1358 = vrot.lane.b32.xlu0 %v1344, 44
        %v1359 = vpop.permute.xlu0 %1358
        %1360 = vrot.lane.b32.xlu0 %v1353, 44
        %v1361 = vpop.permute.xlu0 %1360
        %1362 = vrot.lane.b32.xlu0 %v1345, 44
        %v1363 = vpop.permute.xlu0 %1362
        %1364 = vrot.lane.b32.xlu0 %v1354, 44
        %v1365 = vpop.permute.xlu0 %1364
        %1366 = vrot.lane.b32.xlu0 %v1346, 44
        %v1367 = vpop.permute.xlu0 %1366
        %1368 = vrot.lane.b32.xlu0 %v1355, 44
        %v1369 = vpop.permute.xlu0 %1368
        %vm1370 = vcmask 359424
        %v1371 = vsel %vm1370, %v1357, %v1359
        %v1372 = vsel %vm1370, %v1359, %v1361
        %v1373 = vsel %vm1370, %v1361, %v1363
        %v1374 = vsel %vm1370, %v1363, %v1365
        %v1375 = vsel %vm1370, %v1365, %v1367
        %v1376 = vsel %vm1370, %v1367, %v1369
        %1384 = vst [vmem:[#allocation2 + $0x268] sm:$0xf0] %v1371
        %1385 = vst [vmem:[#allocation2 + $0x270] sm:$0xf0] %v1372
        %1386 = vst [vmem:[#allocation2 + $0x278] sm:$0xf0] %v1373
        %1387 = vst [vmem:[#allocation2 + $0x280] sm:$0xf0] %v1374
        %1388 = vst [vmem:[#allocation2 + $0x288] sm:$0xf0] %v1375
        %1389 = vst [vmem:[#allocation2 + $0x290] sm:$0xf0] %v1376
        %1390 = vst.msk [vmem:[#allocation2 + $0x298] sm:$0xf0] %vm335, %v1369
        %v1391 = vld [vmem:[%s239 + $0x4] sm:$0xff]
        %v1392 = vld [vmem:[%s239 + $0xc] sm:$0xff]
        %v1393 = vld [vmem:[%s239 + $0x14] sm:$0xff]
        %v1394 = vld [vmem:[%s239 + $0x1c] sm:$0xf]
        %v1399 = vcombine.high %v1391, %v1391
        %v1400 = vcombine.high %v1392, %v1392
        %v1401 = vcombine.high %v1393, %v1393
        %1402 = vrot.lane.b32.xlu0 %v1391, 36
        %v1403 = vpop.permute.xlu0 %1402
        %1404 = vrot.lane.b32.xlu0 %v1399, 36
        %v1405 = vpop.permute.xlu0 %1404
        %1406 = vrot.lane.b32.xlu0 %v1392, 36
        %v1407 = vpop.permute.xlu0 %1406
        %1408 = vrot.lane.b32.xlu0 %v1400, 36
        %v1409 = vpop.permute.xlu0 %1408
        %1410 = vrot.lane.b32.xlu0 %v1393, 36
        %v1411 = vpop.permute.xlu0 %1410
        %1412 = vrot.lane.b32.xlu0 %v1401, 36
        %v1413 = vpop.permute.xlu0 %1412
        %1414 = vrot.lane.b32.xlu0 %v1394, 36
        %v1415 = vpop.permute.xlu0 %1414
        %vm1416 = vcmask 293888
        %v1417 = vsel %vm1416, %v1403, %v1405
        %v1418 = vsel %vm1416, %v1405, %v1407
        %v1419 = vsel %vm1416, %v1407, %v1409
        %v1420 = vsel %vm1416, %v1409, %v1411
        %v1421 = vsel %vm1416, %v1411, %v1413
        %v1422 = vsel %vm1416, %v1413, %v1415
        %1430 = vst [vmem:[#allocation2 + $0x2a0] sm:$0xf] %v1417
        %1431 = vst [vmem:[#allocation2 + $0x2a8] sm:$0xf] %v1418
        %1432 = vst [vmem:[#allocation2 + $0x2b0] sm:$0xf] %v1419
        %1433 = vst [vmem:[#allocation2 + $0x2b8] sm:$0xf] %v1420
        %1434 = vst [vmem:[#allocation2 + $0x2c0] sm:$0xf] %v1421
        %1435 = vst [vmem:[#allocation2 + $0x2c8] sm:$0xf] %v1422
        %1436 = vst.msk [vmem:[#allocation2 + $0x2d0] sm:$0xf] %vm287, %v1415
        %v1437 = vld [vmem:[%s239 + $0x4] sm:$0xff]
        %v1438 = vld [vmem:[%s239 + $0xc] sm:$0xff]
        %v1439 = vld [vmem:[%s239 + $0x14] sm:$0xff]
        %v1440 = vld [vmem:[%s239 + $0x1c] sm:$0xf]
        %v1445 = vcombine.low %v1437, %v1437
        %v1446 = vcombine.low %v1438, %v1438
        %v1447 = vcombine.low %v1439, %v1439
        %v1448 = vcombine.low %v1440, %v1440
        %1449 = vrot.lane.b32.xlu0 %v1445, 35
        %v1450 = vpop.permute.xlu0 %1449
        %1451 = vrot.lane.b32.xlu0 %v1437, 35
        %v1452 = vpop.permute.xlu0 %1451
        %1453 = vrot.lane.b32.xlu0 %v1446, 35
        %v1454 = vpop.permute.xlu0 %1453
        %1455 = vrot.lane.b32.xlu0 %v1438, 35
        %v1456 = vpop.permute.xlu0 %1455
        %1457 = vrot.lane.b32.xlu0 %v1447, 35
        %v1458 = vpop.permute.xlu0 %1457
        %1459 = vrot.lane.b32.xlu0 %v1439, 35
        %v1460 = vpop.permute.xlu0 %1459
        %1461 = vrot.lane.b32.xlu0 %v1448, 35
        %v1462 = vpop.permute.xlu0 %1461
        %vm1463 = vcmask 285696
        %v1464 = vsel %vm1463, %v1450, %v1452
        %v1465 = vsel %vm1463, %v1452, %v1454
        %v1466 = vsel %vm1463, %v1454, %v1456
        %v1467 = vsel %vm1463, %v1456, %v1458
        %v1468 = vsel %vm1463, %v1458, %v1460
        %v1469 = vsel %vm1463, %v1460, %v1462
        %1477 = vst [vmem:[#allocation2 + $0x2a0] sm:$0xf0] %v1464
        %1478 = vst [vmem:[#allocation2 + $0x2a8] sm:$0xf0] %v1465
        %1479 = vst [vmem:[#allocation2 + $0x2b0] sm:$0xf0] %v1466
        %1480 = vst [vmem:[#allocation2 + $0x2b8] sm:$0xf0] %v1467
        %1481 = vst [vmem:[#allocation2 + $0x2c0] sm:$0xf0] %v1468
        %1482 = vst [vmem:[#allocation2 + $0x2c8] sm:$0xf0] %v1469
        %1483 = vst.msk [vmem:[#allocation2 + $0x2d0] sm:$0xf0] %vm335, %v1462
        %v1484 = vld [vmem:[%s239 + $0x4] sm:$0xff]
        %v1485 = vld [vmem:[%s239 + $0xc] sm:$0xff]
        %v1486 = vld [vmem:[%s239 + $0x14] sm:$0xff]
        %v1487 = vld [vmem:[%s239 + $0x1c] sm:$0xf]
        %v1492 = vcombine.high %v1484, %v1484
        %v1493 = vcombine.high %v1485, %v1485
        %v1494 = vcombine.high %v1486, %v1486
        %1495 = vrot.lane.b32.xlu0 %v1484, 34
        %v1496 = vpop.permute.xlu0 %1495
        %1497 = vrot.lane.b32.xlu0 %v1492, 34
        %v1498 = vpop.permute.xlu0 %1497
        %1499 = vrot.lane.b32.xlu0 %v1485, 34
        %v1500 = vpop.permute.xlu0 %1499
        %1501 = vrot.lane.b32.xlu0 %v1493, 34
        %v1502 = vpop.permute.xlu0 %1501
        %1503 = vrot.lane.b32.xlu0 %v1486, 34
        %v1504 = vpop.permute.xlu0 %1503
        %1505 = vrot.lane.b32.xlu0 %v1494, 34
        %v1506 = vpop.permute.xlu0 %1505
        %1507 = vrot.lane.b32.xlu0 %v1487, 34
        %v1508 = vpop.permute.xlu0 %1507
        %vm1509 = vcmask 277504
        %v1510 = vsel %vm1509, %v1496, %v1498
        %v1511 = vsel %vm1509, %v1498, %v1500
        %v1512 = vsel %vm1509, %v1500, %v1502
        %v1513 = vsel %vm1509, %v1502, %v1504
        %v1514 = vsel %vm1509, %v1504, %v1506
        %v1515 = vsel %vm1509, %v1506, %v1508
        %1523 = vst [vmem:[#allocation2 + $0x2d8] sm:$0xf] %v1510
        %1524 = vst [vmem:[#allocation2 + $0x2e0] sm:$0xf] %v1511
        %1525 = vst [vmem:[#allocation2 + $0x2e8] sm:$0xf] %v1512
        %1526 = vst [vmem:[#allocation2 + $0x2f0] sm:$0xf] %v1513
        %1527 = vst [vmem:[#allocation2 + $0x2f8] sm:$0xf] %v1514
        %1528 = vst [vmem:[#allocation2 + $0x300] sm:$0xf] %v1515
        %1529 = vst.msk [vmem:[#allocation2 + $0x308] sm:$0xf] %vm287, %v1508
        %v1530 = vld [vmem:[%s1] sm:$0xff]
        %v1531 = vld [vmem:[#allocation2] sm:$0xff]
        %v1532 = vld [vmem:[#allocation2 + $0x8] sm:$0xff]
        %v1533 = vld [vmem:[#allocation2 + $0x10] sm:$0xff]
        %v1534 = vld [vmem:[#allocation2 + $0x18] sm:$0xff]
        %v1535 = vld [vmem:[#allocation2 + $0x20] sm:$0xff]
        %v1536 = vld [vmem:[#allocation2 + $0x28] sm:$0xff]
        %v1537 = vld [vmem:[#allocation2 + $0x30] sm:$0xff]
        %v1538 = vld [vmem:[#allocation2 + $0x38] sm:$0xff]
        %v1539 = vld [vmem:[#allocation2 + $0x40] sm:$0xff]
        %v1540 = vld [vmem:[#allocation2 + $0x48] sm:$0xff]
        %v1541 = vld [vmem:[#allocation2 + $0x50] sm:$0xff]
        %v1542 = vld [vmem:[#allocation2 + $0x58] sm:$0xff]
        %v1543 = vld [vmem:[#allocation2 + $0x60] sm:$0xff]
        %v1544 = vld [vmem:[#allocation2 + $0x68] sm:$0xff]
        %v1545 = vld [vmem:[#allocation2 + $0x70] sm:$0xff]
        %v1546 = vld [vmem:[#allocation2 + $0x78] sm:$0xff]
        %v1547 = vld [vmem:[#allocation2 + $0x80] sm:$0xff]
        %v1548 = vld [vmem:[#allocation2 + $0x88] sm:$0xff]
        %v1549 = vld [vmem:[#allocation2 + $0x90] sm:$0xff]
        %v1550 = vld [vmem:[#allocation2 + $0x98] sm:$0xff]
        %v1551 = vld [vmem:[#allocation2 + $0xa0] sm:$0xff]
        %v1552 = vld [vmem:[#allocation2 + $0xa8] sm:$0xff]
        %v1553 = vld [vmem:[#allocation2 + $0xb0] sm:$0xff]
        %v1554 = vld [vmem:[#allocation2 + $0xb8] sm:$0xff]
        %v1555 = vld [vmem:[#allocation2 + $0xc0] sm:$0xff]
        %v1556 = vld [vmem:[#allocation2 + $0xc8] sm:$0xff]
        %v1557 = vld [vmem:[#allocation2 + $0xd0] sm:$0xff]
        %v1558 = vld [vmem:[#allocation2 + $0xd8] sm:$0xff]
        %v1559 = vld [vmem:[#allocation2 + $0xe0] sm:$0xff]
        %v1560 = vld [vmem:[#allocation2 + $0xe8] sm:$0xff]
        %v1561 = vld [vmem:[#allocation2 + $0xf0] sm:$0xff]
        %v1562 = vld [vmem:[#allocation2 + $0xf8] sm:$0xff]
        %v1563 = vld [vmem:[#allocation2 + $0x100] sm:$0xff]
        %v1564 = vld [vmem:[#allocation2 + $0x108] sm:$0xff]
        %v1565 = vld [vmem:[#allocation2 + $0x110] sm:$0xff]
        %v1566 = vld [vmem:[#allocation2 + $0x118] sm:$0xff]
        %v1567 = vld [vmem:[#allocation2 + $0x120] sm:$0xff]
        %v1568 = vld [vmem:[#allocation2 + $0x128] sm:$0xff]
        %v1569 = vld [vmem:[#allocation2 + $0x130] sm:$0xff]
        %v1570 = vld [vmem:[#allocation2 + $0x138] sm:$0xff]
        %v1571 = vld [vmem:[#allocation2 + $0x140] sm:$0xff]
        %v1572 = vld [vmem:[#allocation2 + $0x148] sm:$0xff]
        %v1573 = vld [vmem:[#allocation2 + $0x150] sm:$0xff]
        %v1574 = vld [vmem:[#allocation2 + $0x158] sm:$0xff]
        %v1575 = vld [vmem:[#allocation2 + $0x160] sm:$0xff]
        %v1576 = vld [vmem:[#allocation2 + $0x168] sm:$0xff]
        %v1577 = vld [vmem:[#allocation2 + $0x170] sm:$0xff]
        %v1578 = vld [vmem:[#allocation2 + $0x178] sm:$0xff]
        %v1579 = vld [vmem:[#allocation2 + $0x180] sm:$0xff]
        %v1580 = vld [vmem:[#allocation2 + $0x188] sm:$0xff]
        %v1581 = vld [vmem:[#allocation2 + $0x190] sm:$0xff]
        %v1582 = vld [vmem:[#allocation2 + $0x198] sm:$0xff]
        %v1583 = vld [vmem:[#allocation2 + $0x1a0] sm:$0xff]
        %v1584 = vld [vmem:[#allocation2 + $0x1a8] sm:$0xff]
        %v1585 = vld [vmem:[#allocation2 + $0x1b0] sm:$0xff]
        %v1586 = vld [vmem:[#allocation2 + $0x1b8] sm:$0xff]
        %v1587 = vld [vmem:[#allocation2 + $0x1c0] sm:$0xff]
        %v1588 = vld [vmem:[#allocation2 + $0x1c8] sm:$0xff]
        %v1589 = vld [vmem:[#allocation2 + $0x1d0] sm:$0xff]
        %v1590 = vld [vmem:[#allocation2 + $0x1d8] sm:$0xff]
        %v1591 = vld [vmem:[#allocation2 + $0x1e0] sm:$0xff]
        %v1592 = vld [vmem:[#allocation2 + $0x1e8] sm:$0xff]
        %v1593 = vld [vmem:[#allocation2 + $0x1f0] sm:$0xff]
        %v1594 = vld [vmem:[#allocation2 + $0x1f8] sm:$0xff]
        %v1595 = vld [vmem:[#allocation2 + $0x200] sm:$0xff]
        %v1596 = vld [vmem:[#allocation2 + $0x208] sm:$0xff]
        %v1597 = vld [vmem:[#allocation2 + $0x210] sm:$0xff]
        %v1598 = vld [vmem:[#allocation2 + $0x218] sm:$0xff]
        %v1599 = vld [vmem:[#allocation2 + $0x220] sm:$0xff]
        %v1600 = vld [vmem:[#allocation2 + $0x228] sm:$0xff]
        %v1601 = vld [vmem:[#allocation2 + $0x230] sm:$0xff]
        %v1602 = vld [vmem:[#allocation2 + $0x238] sm:$0xff]
        %v1603 = vld [vmem:[#allocation2 + $0x240] sm:$0xff]
        %v1604 = vld [vmem:[#allocation2 + $0x248] sm:$0xff]
        %v1605 = vld [vmem:[#allocation2 + $0x250] sm:$0xff]
        %v1606 = vld [vmem:[#allocation2 + $0x258] sm:$0xff]
        %v1607 = vld [vmem:[#allocation2 + $0x260] sm:$0xff]
        %v1608 = vld [vmem:[#allocation2 + $0x268] sm:$0xff]
        %v1609 = vld [vmem:[#allocation2 + $0x270] sm:$0xff]
        %v1610 = vld [vmem:[#allocation2 + $0x278] sm:$0xff]
        %v1611 = vld [vmem:[#allocation2 + $0x280] sm:$0xff]
        %v1612 = vld [vmem:[#allocation2 + $0x288] sm:$0xff]
        %v1613 = vld [vmem:[#allocation2 + $0x290] sm:$0xff]
        %v1614 = vld [vmem:[#allocation2 + $0x298] sm:$0xff]
        %v1615 = vld [vmem:[#allocation2 + $0x2a0] sm:$0xff]
        %v1616 = vld [vmem:[#allocation2 + $0x2a8] sm:$0xff]
        %v1617 = vld [vmem:[#allocation2 + $0x2b0] sm:$0xff]
        %v1618 = vld [vmem:[#allocation2 + $0x2b8] sm:$0xff]
        %v1619 = vld [vmem:[#allocation2 + $0x2c0] sm:$0xff]
        %v1620 = vld [vmem:[#allocation2 + $0x2c8] sm:$0xff]
        %v1621 = vld [vmem:[#allocation2 + $0x2d0] sm:$0xff]
        %v1622 = vld [vmem:[#allocation2 + $0x2d8] sm:$0xf]
        %v1623 = vld [vmem:[#allocation2 + $0x2e0] sm:$0xf]
        %v1624 = vld [vmem:[#allocation2 + $0x2e8] sm:$0xf]
        %v1625 = vld [vmem:[#allocation2 + $0x2f0] sm:$0xf]
        %v1626 = vld [vmem:[#allocation2 + $0x2f8] sm:$0xf]
        %v1627 = vld [vmem:[#allocation2 + $0x300] sm:$0xf]
        %v1628 = vld [vmem:[#allocation2 + $0x308] sm:$0xf]
        %v1629 = vld [vmem:[%s2] sm:$0xff]
        %1631 = vset.pattern.permute.xlu0 0
        %1632 = vperm.xlu0 %1631, %v1629
        %v1633 = vpop.permute.xlu0 %1632
        %v1636 = vsel %vm548, %v1530, 0
        %vm1638 = vcmask 1043456
        %v1640 = vsel %vm1638, %v1622, 0
        %v1643 = vsel %vm1638, %v1623, 0
        %v1646 = vsel %vm1638, %v1624, 0
        %v1649 = vsel %vm1638, %v1625, 0
        %v1652 = vsel %vm1638, %v1626, 0
        %v1655 = vsel %vm1638, %v1627, 0
        %v1658 = vsel %vm1638, %v1628, 0
        %1660 = vmatprep.subr.mxu0 %v1532
        %1661 = vmatpush1.msra.mxu0 %v1531
        %1662 = vmatprep.subr.mxu0 %v1539
        %1663 = vmatpush1.msra.mxu0 %v1538
        %1664 = vmatprep.subr.mxu0 %v1546
        %1665 = vmatpush1.msra.mxu0 %v1545
        %1666 = vmatprep.subr.mxu0 %v1553
        %1667 = vmatpush1.msra.mxu0 %v1552
        %1668 = vmatprep.subr.mxu0 %v1560
        %1669 = vmatpush1.msra.mxu0 %v1559
        %1670 = vmatprep.subr.mxu0 %v1567
        %1671 = vmatpush1.msra.mxu0 %v1566
        %1672 = vmatprep.subr.mxu0 %v1574
        %1673 = vmatpush1.msra.mxu0 %v1573
        %1674 = vmatprep.subr.mxu0 %v1581
        %1675 = vmatpush1.msra.mxu0 %v1580
        %1676 = vmatprep.subr.mxu0 %v1588
        %1677 = vmatpush1.msra.mxu0 %v1587
        %1678 = vmatprep.subr.mxu0 %v1595
        %1679 = vmatpush1.msra.mxu0 %v1594
        %1680 = vmatprep.subr.mxu0 %v1602
        %1681 = vmatpush1.msra.mxu0 %v1601
        %1682 = vmatprep.subr.mxu0 %v1609
        %1683 = vmatpush1.msra.mxu0 %v1608
        %1684 = vmatprep.subr.mxu0 %v1616
        %1685 = vmatpush1.msra.mxu0 %v1615
        %1686 = vmatprep.subr.mxu0 %v1643
        %1687 = vmatpush1.msra.mxu0 %v1640
        %1688 = vmatprep.subr.mxu0 0.0
        %1689 = vmatpush1.msra.mxu0 0.0
        %1690 = vmatprep.subr.mxu0 0.0
        %1691 = vmatpush1.msra.mxu0 0.0
        %1692 = vmatprep.subr.mxu0 0.0
        %1693 = vmatpush1.msra.mxu0 0.0
        %1694 = vmatprep.subr.mxu0 0.0
        %1695 = vmatpush1.msra.mxu0 0.0
        %1696 = vmatprep.subr.mxu0 0.0
        %1697 = vmatpush1.msra.mxu0 0.0
        %1698 = vmatprep.subr.mxu0 0.0
        %1699 = vmatpush1.msra.mxu0 0.0
        %1700 = vmatprep.subr.mxu0 0.0
        %1701 = vmatpush1.msra.mxu0 0.0
        %1702 = vmatprep.subr.mxu0 0.0
        %1703 = vmatpush1.msra.mxu0 0.0
        %1704 = vmatprep.subr.mxu0 0.0
        %1705 = vmatpush1.msra.mxu0 0.0
        %1706 = vmatprep.subr.mxu0 0.0
        %1707 = vmatpush1.msra.mxu0 0.0
        %1708 = vmatprep.subr.mxu0 0.0
        %1709 = vmatpush1.msra.mxu0 0.0
        %1710 = vmatprep.subr.mxu0 0.0
        %1711 = vmatpush1.msra.mxu0 0.0
        %1712 = vmatprep.subr.mxu0 0.0
        %1713 = vmatpush1.msra.mxu0 0.0
        %1714 = vmatprep.subr.mxu0 0.0
        %1715 = vmatpush1.msra.mxu0 0.0
        %1716 = vmatprep.subr.mxu0 0.0
        %1717 = vmatpush1.msra.mxu0 0.0
        %1718 = vmatprep.subr.mxu0 0.0
        %1719 = vmatpush1.msra.mxu0 0.0
        %1720 = vmatprep.subr.mxu0 0.0
        %1721 = vmatpush1.msra.mxu0 0.0
        %1722 = vmatprep.subr.mxu0 0.0
        %1723 = vmatpush1.msra.mxu0 0.0
        %1724 = vmatprep.mubr.f32.mxu0 0.0
        %1725 = vmatmul.mubr.f32.gmra.mrb[0].mxu0 %v1636
        %v1726 = vpop.f32.mrb[0].mxu0
        %v1727 = vadd.f32 %v1633, %v1726
        %v1728 = vpop.f32.mrb[0].mxu0
        %v1729 = vadd.f32 %v1633, %v1728
        %1730 = vdwg.mxu0
        %1731 = vmatprep.subr.mxu0 %v1534
        %1732 = vmatpush1.msra.mxu0 %v1533
        %1733 = vmatprep.subr.mxu0 %v1541
        %1734 = vmatpush1.msra.mxu0 %v1540
        %1735 = vmatprep.subr.mxu0 %v1548
        %1736 = vmatpush1.msra.mxu0 %v1547
        %1737 = vmatprep.subr.mxu0 %v1555
        %1738 = vmatpush1.msra.mxu0 %v1554
        %1739 = vmatprep.subr.mxu0 %v1562
        %1740 = vmatpush1.msra.mxu0 %v1561
        %1741 = vmatprep.subr.mxu0 %v1569
        %1742 = vmatpush1.msra.mxu0 %v1568
        %1743 = vmatprep.subr.mxu0 %v1576
        %1744 = vmatpush1.msra.mxu0 %v1575
        %1745 = vmatprep.subr.mxu0 %v1583
        %1746 = vmatpush1.msra.mxu0 %v1582
        %1747 = vmatprep.subr.mxu0 %v1590
        %1748 = vmatpush1.msra.mxu0 %v1589
        %1749 = vmatprep.subr.mxu0 %v1597
        %1750 = vmatpush1.msra.mxu0 %v1596
        %1751 = vmatprep.subr.mxu0 %v1604
        %1752 = vmatpush1.msra.mxu0 %v1603
        %1753 = vmatprep.subr.mxu0 %v1611
        %1754 = vmatpush1.msra.mxu0 %v1610
        %1755 = vmatprep.subr.mxu0 %v1618
        %1756 = vmatpush1.msra.mxu0 %v1617
        %1757 = vmatprep.subr.mxu0 %v1649
        %1758 = vmatpush1.msra.mxu0 %v1646
        %1759 = vmatprep.subr.mxu0 0.0
        %1760 = vmatpush1.msra.mxu0 0.0
        %1761 = vmatprep.subr.mxu0 0.0
        %1762 = vmatpush1.msra.mxu0 0.0
        %1763 = vmatprep.subr.mxu0 0.0
        %1764 = vmatpush1.msra.mxu0 0.0
        %1765 = vmatprep.subr.mxu0 0.0
        %1766 = vmatpush1.msra.mxu0 0.0
        %1767 = vmatprep.subr.mxu0 0.0
        %1768 = vmatpush1.msra.mxu0 0.0
        %1769 = vmatprep.subr.mxu0 0.0
        %1770 = vmatpush1.msra.mxu0 0.0
        %1771 = vmatprep.subr.mxu0 0.0
        %1772 = vmatpush1.msra.mxu0 0.0
        %1773 = vmatprep.subr.mxu0 0.0
        %1774 = vmatpush1.msra.mxu0 0.0
        %1775 = vmatprep.subr.mxu0 0.0
        %1776 = vmatpush1.msra.mxu0 0.0
        %1777 = vmatprep.subr.mxu0 0.0
        %1778 = vmatpush1.msra.mxu0 0.0
        %1779 = vmatprep.subr.mxu0 0.0
        %1780 = vmatpush1.msra.mxu0 0.0
        %1781 = vmatprep.subr.mxu0 0.0
        %1782 = vmatpush1.msra.mxu0 0.0
        %1783 = vmatprep.subr.mxu0 0.0
        %1784 = vmatpush1.msra.mxu0 0.0
        %1785 = vmatprep.subr.mxu0 0.0
        %1786 = vmatpush1.msra.mxu0 0.0
        %1787 = vmatprep.subr.mxu0 0.0
        %1788 = vmatpush1.msra.mxu0 0.0
        %1789 = vmatprep.subr.mxu0 0.0
        %1790 = vmatpush1.msra.mxu0 0.0
        %1791 = vmatprep.subr.mxu0 0.0
        %1792 = vmatpush1.msra.mxu0 0.0
        %1793 = vmatprep.subr.mxu0 0.0
        %1794 = vmatpush1.msra.mxu0 0.0
        %1795 = vmatprep.mubr.f32.mxu0 0.0
        %1796 = vmatmul.mubr.f32.gmra.mrb[0].mxu0 %v1636
        %v1797 = vpop.f32.mrb[0].mxu0
        %v1798 = vadd.f32 %v1633, %v1797
        %v1799 = vpop.f32.mrb[0].mxu0
        %v1800 = vadd.f32 %v1633, %v1799
        %1801 = vdwg.mxu0
        %1802 = vmatprep.subr.mxu0 %v1536
        %1803 = vmatpush1.msra.mxu0 %v1535
        %1804 = vmatprep.subr.mxu0 %v1543
        %1805 = vmatpush1.msra.mxu0 %v1542
        %1806 = vmatprep.subr.mxu0 %v1550
        %1807 = vmatpush1.msra.mxu0 %v1549
        %1808 = vmatprep.subr.mxu0 %v1557
        %1809 = vmatpush1.msra.mxu0 %v1556
        %1810 = vmatprep.subr.mxu0 %v1564
        %1811 = vmatpush1.msra.mxu0 %v1563
        %1812 = vmatprep.subr.mxu0 %v1571
        %1813 = vmatpush1.msra.mxu0 %v1570
        %1814 = vmatprep.subr.mxu0 %v1578
        %1815 = vmatpush1.msra.mxu0 %v1577
        %1816 = vmatprep.subr.mxu0 %v1585
        %1817 = vmatpush1.msra.mxu0 %v1584
        %1818 = vmatprep.subr.mxu0 %v1592
        %1819 = vmatpush1.msra.mxu0 %v1591
        %1820 = vmatprep.subr.mxu0 %v1599
        %1821 = vmatpush1.msra.mxu0 %v1598
        %1822 = vmatprep.subr.mxu0 %v1606
        %1823 = vmatpush1.msra.mxu0 %v1605
        %1824 = vmatprep.subr.mxu0 %v1613
        %1825 = vmatpush1.msra.mxu0 %v1612
        %1826 = vmatprep.subr.mxu0 %v1620
        %1827 = vmatpush1.msra.mxu0 %v1619
        %1828 = vmatprep.subr.mxu0 %v1655
        %1829 = vmatpush1.msra.mxu0 %v1652
        %1830 = vmatprep.subr.mxu0 0.0
        %1831 = vmatpush1.msra.mxu0 0.0
        %1832 = vmatprep.subr.mxu0 0.0
        %1833 = vmatpush1.msra.mxu0 0.0
        %1834 = vmatprep.subr.mxu0 0.0
        %1835 = vmatpush1.msra.mxu0 0.0
        %1836 = vmatprep.subr.mxu0 0.0
        %1837 = vmatpush1.msra.mxu0 0.0
        %1838 = vmatprep.subr.mxu0 0.0
        %1839 = vmatpush1.msra.mxu0 0.0
        %1840 = vmatprep.subr.mxu0 0.0
        %1841 = vmatpush1.msra.mxu0 0.0
        %1842 = vmatprep.subr.mxu0 0.0
        %1843 = vmatpush1.msra.mxu0 0.0
        %1844 = vmatprep.subr.mxu0 0.0
        %1845 = vmatpush1.msra.mxu0 0.0
        %1846 = vmatprep.subr.mxu0 0.0
        %1847 = vmatpush1.msra.mxu0 0.0
        %1848 = vmatprep.subr.mxu0 0.0
        %1849 = vmatpush1.msra.mxu0 0.0
        %1850 = vmatprep.subr.mxu0 0.0
        %1851 = vmatpush1.msra.mxu0 0.0
        %1852 = vmatprep.subr.mxu0 0.0
        %1853 = vmatpush1.msra.mxu0 0.0
        %1854 = vmatprep.subr.mxu0 0.0
        %1855 = vmatpush1.msra.mxu0 0.0
        %1856 = vmatprep.subr.mxu0 0.0
        %1857 = vmatpush1.msra.mxu0 0.0
        %1858 = vmatprep.subr.mxu0 0.0
        %1859 = vmatpush1.msra.mxu0 0.0
        %1860 = vmatprep.subr.mxu0 0.0
        %1861 = vmatpush1.msra.mxu0 0.0
        %1862 = vmatprep.subr.mxu0 0.0
        %1863 = vmatpush1.msra.mxu0 0.0
        %1864 = vmatprep.subr.mxu0 0.0
        %1865 = vmatpush1.msra.mxu0 0.0
        %1866 = vmatprep.mubr.f32.mxu0 0.0
        %1867 = vmatmul.mubr.f32.gmra.mrb[0].mxu0 %v1636
        %v1868 = vpop.f32.mrb[0].mxu0
        %v1869 = vadd.f32 %v1633, %v1868
        %v1870 = vpop.f32.mrb[0].mxu0
        %v1871 = vadd.f32 %v1633, %v1870
        %1872 = vdwg.mxu0
        %1873 = vmatprep.subr.mxu0 0.0
        %1874 = vmatpush1.msra.mxu0 %v1537
        %1875 = vmatprep.subr.mxu0 0.0
        %1876 = vmatpush1.msra.mxu0 %v1544
        %1877 = vmatprep.subr.mxu0 0.0
        %1878 = vmatpush1.msra.mxu0 %v1551
        %1879 = vmatprep.subr.mxu0 0.0
        %1880 = vmatpush1.msra.mxu0 %v1558
        %1881 = vmatprep.subr.mxu0 0.0
        %1882 = vmatpush1.msra.mxu0 %v1565
        %1883 = vmatprep.subr.mxu0 0.0
        %1884 = vmatpush1.msra.mxu0 %v1572
        %1885 = vmatprep.subr.mxu0 0.0
        %1886 = vmatpush1.msra.mxu0 %v1579
        %1887 = vmatprep.subr.mxu0 0.0
        %1888 = vmatpush1.msra.mxu0 %v1586
        %1889 = vmatprep.subr.mxu0 0.0
        %1890 = vmatpush1.msra.mxu0 %v1593
        %1891 = vmatprep.subr.mxu0 0.0
        %1892 = vmatpush1.msra.mxu0 %v1600
        %1893 = vmatprep.subr.mxu0 0.0
        %1894 = vmatpush1.msra.mxu0 %v1607
        %1895 = vmatprep.subr.mxu0 0.0
        %1896 = vmatpush1.msra.mxu0 %v1614
        %1897 = vmatprep.subr.mxu0 0.0
        %1898 = vmatpush1.msra.mxu0 %v1621
        %1899 = vmatprep.subr.mxu0 0.0
        %1900 = vmatpush1.msra.mxu0 %v1658
        %1901 = vmatprep.subr.mxu0 0.0
        %1902 = vmatpush1.msra.mxu0 0.0
        %1903 = vmatprep.subr.mxu0 0.0
        %1904 = vmatpush1.msra.mxu0 0.0
        %1905 = vmatprep.subr.mxu0 0.0
        %1906 = vmatpush1.msra.mxu0 0.0
        %1907 = vmatprep.subr.mxu0 0.0
        %1908 = vmatpush1.msra.mxu0 0.0
        %1909 = vmatprep.subr.mxu0 0.0
        %1910 = vmatpush1.msra.mxu0 0.0
        %1911 = vmatprep.subr.mxu0 0.0
        %1912 = vmatpush1.msra.mxu0 0.0
        %1913 = vmatprep.subr.mxu0 0.0
        %1914 = vmatpush1.msra.mxu0 0.0
        %1915 = vmatprep.subr.mxu0 0.0
        %1916 = vmatpush1.msra.mxu0 0.0
        %1917 = vmatprep.subr.mxu0 0.0
        %1918 = vmatpush1.msra.mxu0 0.0
        %1919 = vmatprep.subr.mxu0 0.0
        %1920 = vmatpush1.msra.mxu0 0.0
        %1921 = vmatprep.subr.mxu0 0.0
        %1922 = vmatpush1.msra.mxu0 0.0
        %1923 = vmatprep.subr.mxu0 0.0
        %1924 = vmatpush1.msra.mxu0 0.0
        %1925 = vmatprep.subr.mxu0 0.0
        %1926 = vmatpush1.msra.mxu0 0.0
        %1927 = vmatprep.subr.mxu0 0.0
        %1928 = vmatpush1.msra.mxu0 0.0
        %1929 = vmatprep.subr.mxu0 0.0
        %1930 = vmatpush1.msra.mxu0 0.0
        %1931 = vmatprep.subr.mxu0 0.0
        %1932 = vmatpush1.msra.mxu0 0.0
        %1933 = vmatprep.subr.mxu0 0.0
        %1934 = vmatpush1.msra.mxu0 0.0
        %1935 = vmatprep.subr.mxu0 0.0
        %1936 = vmatpush1.msra.mxu0 0.0
        %1937 = vmatprep.mubr.f32.mxu0 0.0
        %1938 = vmatmul.mubr.f32.gmra.mrb[0].mxu0 %v1636
        %v1939 = vpop.f32.mrb[0].mxu0
        %v1940 = vadd.f32 %v1633, %v1939
        %v1941 = vpop.f32.mrb[0].mxu0
        %1942 = vdwg.mxu0
        %v1943 = vmax.f32 %v1727, 0.0
        %v1944 = vmax.f32 %v1729, 0.0
        %v1945 = vmax.f32 %v1798, 0.0
        %v1946 = vmax.f32 %v1800, 0.0
        %v1947 = vmax.f32 %v1869, 0.0
        %v1948 = vmax.f32 %v1871, 0.0
        %v1949 = vmax.f32 %v1940, 0.0
        %v1950 = vld [vmem:[%s5] sm:$0x7f]
        %v1952 = vlaneseq
        %v1953 = vshrl.u32 %v1952, 7
        %v1954 = vsub.s32 0, %v1953
        %v1955 = vrot.slane %v1950, %v1954
        %v1956 = vlaneseq
        %v1957 = vshrl.u32 %v1956, 7
        %v1958 = vsub.s32 1, %v1957
        %v1959 = vrot.slane %v1950, %v1958
        %v1960 = vlaneseq
        %v1961 = vshrl.u32 %v1960, 7
        %v1962 = vsub.s32 2, %v1961
        %v1963 = vrot.slane %v1950, %v1962
        %v1964 = vlaneseq
        %v1965 = vshrl.u32 %v1964, 7
        %v1966 = vsub.s32 3, %v1965
        %v1967 = vrot.slane %v1950, %v1966
        %v1968 = vlaneseq
        %v1969 = vshrl.u32 %v1968, 7
        %v1970 = vsub.s32 4, %v1969
        %v1971 = vrot.slane %v1950, %v1970
        %v1972 = vlaneseq
        %v1973 = vshrl.u32 %v1972, 7
        %v1974 = vsub.s32 5, %v1973
        %v1975 = vrot.slane %v1950, %v1974
        %v1976 = vlaneseq
        %v1977 = vshrl.u32 %v1976, 7
        %v1978 = vsub.s32 6, %v1977
        %v1979 = vrot.slane %v1950, %v1978
        %v1987 = vmul.f32 %v1943, %v1955
        %v1988 = vmul.f32 %v1944, %v1959
        %v1989 = vmul.f32 %v1945, %v1963
        %v1990 = vmul.f32 %v1946, %v1967
        %v1991 = vmul.f32 %v1947, %v1971
        %v1992 = vmul.f32 %v1948, %v1975
        %v1993 = vmul.f32 %v1949, %v1979
        %v1994 = vadd.f32 %v1987, %v1988
        %v1995 = vadd.f32 %v1994, %v1989
        %v1996 = vadd.f32 %v1995, %v1990
        %v1997 = vadd.f32 %v1996, %v1991
        %v1998 = vadd.f32 %v1997, %v1992
        %vm1999 = vcmask 261120
        %v2000 = vsel %vm1999, %v1993, 0.0
        %v2001 = vadd.f32 %v1998, %v2000
        %2002 = vadd.xlane.f32.xlu0 %v2001
        %v2003 = vpop.xlane.xlu0 %2002
        %v2004 = vrot.slane %v2003, 4
        %v2005 = vadd.f32 %v2003, %v2004
        %v2006 = vrot.slane %v2005, 2
        %v2007 = vadd.f32 %v2005, %v2006
        %v2008 = vrot.slane %v2007, 1
        %v2009 = vadd.f32 %v2007, %v2008
        %s2010 = vtos %v2009
        %v2011 = vrcp.pop 4096.0
        %s2012 = vtos %v2011
        %s2013 = smul.f32 %s2010, %s2012
        %v2014 = vstv %s2013
        %v2015 = vsub.f32 %v1943, %v2014
        %v2016 = vsub.f32 %v1944, %v2014
        %v2017 = vsub.f32 %v1945, %v2014
        %v2018 = vsub.f32 %v1946, %v2014
        %v2019 = vsub.f32 %v1947, %v2014
        %v2020 = vsub.f32 %v1948, %v2014
        %v2021 = vsub.f32 %v1949, %v2014
        %v2022 = vmul.f32 %v2015, %v1955
        %v2023 = vmul.f32 %v2016, %v1959
        %v2024 = vmul.f32 %v2017, %v1963
        %v2025 = vmul.f32 %v2018, %v1967
        %v2026 = vmul.f32 %v2019, %v1971
        %v2027 = vmul.f32 %v2020, %v1975
        %v2028 = vmul.f32 %v2021, %v1979
        %v2029 = vmul.f32 %v2022, %v2022
        %v2030 = vmul.f32 %v2023, %v2023
        %v2031 = vmul.f32 %v2024, %v2024
        %v2032 = vmul.f32 %v2025, %v2025
        %v2033 = vmul.f32 %v2026, %v2026
        %v2034 = vmul.f32 %v2027, %v2027
        %v2035 = vmul.f32 %v2028, %v2028
        %v2036 = vadd.f32 %v2029, %v2030
        %v2037 = vadd.f32 %v2036, %v2031
        %v2038 = vadd.f32 %v2037, %v2032
        %v2039 = vadd.f32 %v2038, %v2033
        %v2040 = vadd.f32 %v2039, %v2034
        %v2041 = vsel %vm1999, %v2035, 0.0
        %v2042 = vadd.f32 %v2040, %v2041
        %2043 = vadd.xlane.f32.xlu0 %v2042
        %v2044 = vpop.xlane.xlu0 %2043
        %v2045 = vrot.slane %v2044, 4
        %v2046 = vadd.f32 %v2044, %v2045
        %v2047 = vrot.slane %v2046, 2
        %v2048 = vadd.f32 %v2046, %v2047
        %v2049 = vrot.slane %v2048, 1
        %v2050 = vadd.f32 %v2048, %v2049
        %s2051 = vtos %v2050
        %v2052 = vrcp.pop 4096.0
        %s2053 = vtos %v2052
        %s2054 = smul.f32 %s2051, %s2053
        %s2055 = sadd.f32 %s2054, 1e-05
        %v2056 = vstv %s2055
        %v2057 = vrsqrt.pop %v2056
        %s2058 = vtos %v2057
        %v2059 = vstv %s2058
        %v2060 = vmul.f32 %v2022, %v2059
        %v2061 = vmul.f32 %v2023, %v2059
        %v2062 = vmul.f32 %v2024, %v2059
        %v2063 = vmul.f32 %v2025, %v2059
        %v2064 = vmul.f32 %v2026, %v2059
        %v2065 = vmul.f32 %v2027, %v2059
        %v2066 = vmul.f32 %v2028, %v2059
        %v2067 = vld [vmem:[%s3] sm:$0xff]
        %2069 = vset.pattern.permute.xlu0 0
        %2070 = vperm.xlu0 %2069, %v2067
        %v2071 = vpop.permute.xlu0 %2070
        %v2073 = vmul.f32 %v2060, %v2071
        %v2074 = vmul.f32 %v2061, %v2071
        %v2075 = vmul.f32 %v2062, %v2071
        %v2076 = vmul.f32 %v2063, %v2071
        %v2077 = vmul.f32 %v2064, %v2071
        %v2078 = vmul.f32 %v2065, %v2071
        %v2079 = vmul.f32 %v2066, %v2071
        %v2080 = vld [vmem:[%s4] sm:$0xff]
        %2082 = vset.pattern.permute.xlu0 0
        %2083 = vperm.xlu0 %2082, %v2080
        %v2084 = vpop.permute.xlu0 %2083
        %v2086 = vadd.f32 %v2073, %v2084
        %v2087 = vadd.f32 %v2074, %v2084
        %v2088 = vadd.f32 %v2075, %v2084
        %v2089 = vadd.f32 %v2076, %v2084
        %v2090 = vadd.f32 %v2077, %v2084
        %v2091 = vadd.f32 %v2078, %v2084
        %v2092 = vadd.f32 %v2079, %v2084
        %2093 = vst [vmem:[%s267] sm:$0xff] %v2086
        %2094 = vst [vmem:[%s267 + $0x8] sm:$0xff] %v2087
        %2095 = vst [vmem:[%s267 + $0x10] sm:$0xff] %v2088
        %2096 = vst [vmem:[%s267 + $0x18] sm:$0xff] %v2089
        %2097 = vst [vmem:[%s267 + $0x20] sm:$0xff] %v2090
        %2098 = vst [vmem:[%s267 + $0x28] sm:$0xff] %v2091
        %2099 = vst.msk [vmem:[%s267 + $0x30] sm:$0xff] %vm1999, %v2092
        %s2100 = sand.u32 %s162, 1
        %s2101 = scalar_lea.sflag [#allocation5], %s2100
        %s2102 = sand.u32 %s162, 1
        %s2103 = smul.addr %s2102, 56
        %s2104 = scalar_lea.vmem [#allocation6], %s2103
        // Predicated region
        $region49: #{tpu_custom_call.1} parent=43 // pred_check
          %p2105 = pneg %p172
        $region50: #{tpu_custom_call.1} parent=43 // pred_check_branch
          %2107 = sbr.rel (%p2105) target = $region52
        $region51: #{tpu_custom_call.1} parent=43 // pred_region
          %s2109 = ssub.s32 896, 896
          %2110 = vsyncadd %s2101, %s2109
          %s2111 = smul.addr %s23, 7
          %s2112 = smul.addr %s2111, 128
          %s2113 = scalar_lea.hbm %s6, %s2112
          %s2115 = sshll.u32 %s2104, 4
          %s2116 = int_to_ptr.vmem [resolvable:$true] %s2115
          %2118 = dma.vmem_to_hbm [thread:$0]  %s2116, 896, %s2113, %s2101
        $region52: #{tpu_custom_call.1} parent=43 // pred_fallthru
          _
      $region44: #{tpu_custom_call.1} parent=5 // pred_fallthru
        _
      %p2119 = scmp.le.s32.totalorder 2, %s18
      // Predicated region
      $region53: #{tpu_custom_call.1} parent=5 // pred_check
        %p2120 = pneg %p2119
      $region54: #{tpu_custom_call.1} parent=5 // pred_check_branch
        %2122 = sbr.rel (%p2120) target = $region56
      $region55: #{tpu_custom_call.1} parent=5 // pred_region
        %s2123 = ssub.s32 %s18, 2
        // Predicated region
        $region57: #{tpu_custom_call.1} parent=55 // pred_check
          %p2124 = pneg %p178
        $region58: #{tpu_custom_call.1} parent=55 // pred_check_branch
          %2126 = sbr.rel (%p2124) target = $region60
        $region59: #{tpu_custom_call.1} parent=55 // pred_region
          %s2127 = sand.u32 %s163, 1
          %s2128 = scalar_lea.sflag [#allocation5], %s2127
          %s2129 = sand.u32 %s163, 1
          %s2130 = smul.addr %s2129, 56
          %s2131 = scalar_lea.vmem [#allocation6], %s2130
          %2132 = dma.done %s2128, 896
        $region60: #{tpu_custom_call.1} parent=55 // pred_fallthru
          _
      $region56: #{tpu_custom_call.1} parent=5 // pred_fallthru
        _
    $region6: #{tpu_custom_call.1} parent=1 // loop_footer
      %s22 = sadd.s32 1, %s18
    $region7: #{tpu_custom_call.1} parent=1 // loop_footer_branch
      %17 = sbr.rel target = $region3
    $region8: #{tpu_custom_call.1} parent=1 // loop_exit
      _
    %2133 = vsyncpa [#allocation4], 1
    %s2134 = scalar_lea.sflag [#allocation4], 1
    %2135 = vsyncpa %s2134, 1
    %2136 = vsyncpa [#allocation5], 1
    %s2137 = scalar_lea.sflag [#allocation5], 1
    %2138 = vsyncpa %s2137, 1

</llo_original>
